<compile_context>
chip_gen: v7x
topology: tpu7x:2x2x1
jax: 0.10.0
libtpu: 0.0.40
codegen_flags: <defaults>
</compile_context>

<pallas_src>
import functools

import jax
import jax.numpy as jnp
from jax import lax
from jax.experimental import pallas as pl
from jax.experimental.pallas import tpu as pltpu


def _round_up(x, m):
    return (x + m - 1) // m * m


def _pick_batch_tile(batch, cap=512):
    """Largest batch tile that divides `batch`, is a multiple of 16 (bf16
    sublane packing) unless it covers the whole batch, gives >=2 tiles when
    possible (v7x megacore), and stays <= cap."""
    tile = batch
    while (tile > 16 and tile % 2 == 0 and (tile // 2) % 16 == 0
           and (tile > cap or tile == batch)):
        tile //= 2
    return tile


def _pick_time_chunk(T, batch_tile, h_pad, n_inputs, target=16,
                     vmem_budget=20 << 20):
    """Largest time chunk <= target that divides T and keeps double-buffered
    blocks + scratch under a conservative VMEM budget (v7x-safe)."""
    def vmem_bytes(tt):
        x_in = 2 * tt * batch_tile * n_inputs * 2        # bf16 x, double-buffered
        outs = 2 * 2 * tt * batch_tile * h_pad * 4       # 2 f32 outputs, double-buffered
        scratch = 2 * batch_tile * h_pad * 4             # inner/outer state scratch
        return x_in + outs + scratch
    tt = max(1, min(target, T))
    while tt > 1 and (T % tt != 0 or vmem_bytes(tt) > vmem_budget):
        tt -= 1
    return tt


# ---------------------------------------------------------------------------
# Kernel 1: fused single time step (matmul + leaky/threshold/penalty update).
# Used by the stateful per-call API.  grid = (batch_tiles,), "parallel".
# ---------------------------------------------------------------------------
def _spiking_step_kernel(x_ref, w_ref, b_ref, prev_ref, inner_ref, outer_ref,
                         *, decay, threshold, keep_scale):
    exc = jnp.dot(x_ref[...], w_ref[...],
                  preferred_element_type=jnp.float32) + b_ref[...]
    inner = exc + prev_ref[...] * decay
    outer = jnp.maximum(inner - threshold, 0.0)
    # inner - (pen/thr)*inner*gate  ==  where(outer>0, inner*(1-pen/thr), inner)
    inner = jnp.where(outer > 0.0, inner * keep_scale, inner)
    inner_ref[...] = inner
    outer_ref[...] = outer


def spiking_step(x_bf16, w_bf16, b, prev_inner, decay, threshold,
                 penalty_threshold, batch_tile=None):
    batch, n_inputs = x_bf16.shape
    h_pad = w_bf16.shape[1]
    if batch_tile is None:
        batch_tile = _pick_batch_tile(batch)
    assert batch % batch_tile == 0
    nb = batch // batch_tile

    kernel = functools.partial(
        _spiking_step_kernel,
        decay=float(decay), threshold=float(threshold),
        keep_scale=1.0 - float(penalty_threshold) / float(threshold))

    return pl.pallas_call(
        kernel,
        grid=(nb,),
        in_specs=[
            pl.BlockSpec((batch_tile, n_inputs), lambda i: (i, 0)),
            pl.BlockSpec((n_inputs, h_pad), lambda i: (0, 0)),   # W pinned in VMEM
            pl.BlockSpec((1, h_pad), lambda i: (0, 0)),          # bias pinned
            pl.BlockSpec((batch_tile, h_pad), lambda i: (i, 0)),
        ],
        out_specs=[
            pl.BlockSpec((batch_tile, h_pad), lambda i: (i, 0)),
            pl.BlockSpec((batch_tile, h_pad), lambda i: (i, 0)),
        ],
        out_shape=[
            jax.ShapeDtypeStruct((batch, h_pad), jnp.float32),
            jax.ShapeDtypeStruct((batch, h_pad), jnp.float32),
        ],
        compiler_params=pltpu.CompilerParams(
            dimension_semantics=("parallel",)),
    )(x_bf16, w_bf16, b, prev_inner)


# ---------------------------------------------------------------------------
# Kernel 2: fused T-step recurrence WITH the excitation matmul fused in.
#   grid = (batch_tiles, T // Tt);  batch axis "parallel", time "arbitrary".
#   State lives in two VMEM scratch buffers, (re)initialized from
#   prev_inner/prev_outer at chunk 0 of every batch tile.
#   Outputs are the DELAYED (pre-update) state/output per step plus the final
#   post-update state (so the wrapper never re-shifts the big arrays).
# ---------------------------------------------------------------------------
def _fused_recurrence_kernel(x_ref, w_ref, b_ref, prev_inner_ref, prev_outer_ref,
                             states_ref, outputs_ref, fin_inner_ref, fin_outer_ref,
                             inner_sc, outer_sc,
                             *, decay, threshold, keep_scale, tt):
    chunk = pl.program_id(1)

    @pl.when(chunk == 0)
    def _():
        inner_sc[...] = prev_inner_ref[...]
        outer_sc[...] = prev_outer_ref[...]

    def body(t, carry):
        # Emit the delayed (pre-update) state/output for this time step.
        states_ref[t] = inner_sc[...]
        outputs_ref[t] = outer_sc[...]
        # Tiny fused excitation matmul: bf16 inputs, f32 MXU accumulation.
        exc = jnp.dot(x_ref[t], w_ref[...],
                      preferred_element_type=jnp.float32) + b_ref[...]
        inner = exc + inner_sc[...] * decay
        outer = jnp.maximum(inner - threshold, 0.0)
        inner = jnp.where(outer > 0.0, inner * keep_scale, inner)
        inner_sc[...] = inner
        outer_sc[...] = outer
        return carry

    lax.fori_loop(0, tt, body, 0, unroll=True)

    # Final post-update state; block index is constant along the time axis so
    # only the last chunk's values survive the single writeback.
    fin_inner_ref[...] = inner_sc[...]
    fin_outer_ref[...] = outer_sc[...]


def spiking_recurrence_fused(x_bf16, w_bf16, b, prev_inner, prev_outer,
                             decay, threshold, penalty_threshold,
                             batch_tile=None, time_chunk=None):
    T, batch, n_inputs = x_bf16.shape
    h_pad = w_bf16.shape[1]
    if batch_tile is None:
        batch_tile = _pick_batch_tile(batch)
    assert batch % batch_tile == 0
    nb = batch // batch_tile
    if time_chunk is None:
        time_chunk = _pick_time_chunk(T, batch_tile, h_pad, n_inputs)
    assert T % time_chunk == 0
    nc = T // time_chunk

    kernel = functools.partial(
        _fused_recurrence_kernel,
        decay=float(decay), threshold=float(threshold),
        keep_scale=1.0 - float(penalty_threshold) / float(threshold),
        tt=time_chunk)

    return pl.pallas_call(
        kernel,
        grid=(nb, nc),
        in_specs=[
            pl.BlockSpec((time_chunk, batch_tile, n_inputs),
                         lambda bt, c: (c, bt, 0)),
            pl.BlockSpec((n_inputs, h_pad), lambda bt, c: (0, 0)),  # W pinned
            pl.BlockSpec((1, h_pad), lambda bt, c: (0, 0)),         # bias pinned
            pl.BlockSpec((batch_tile, h_pad), lambda bt, c: (bt, 0)),
            pl.BlockSpec((batch_tile, h_pad), lambda bt, c: (bt, 0)),
        ],
        out_specs=[
            pl.BlockSpec((time_chunk, batch_tile, h_pad), lambda bt, c: (c, bt, 0)),
            pl.BlockSpec((time_chunk, batch_tile, h_pad), lambda bt, c: (c, bt, 0)),
            pl.BlockSpec((batch_tile, h_pad), lambda bt, c: (bt, 0)),
            pl.BlockSpec((batch_tile, h_pad), lambda bt, c: (bt, 0)),
        ],
        out_shape=[
            jax.ShapeDtypeStruct((T, batch, h_pad), jnp.float32),   # delayed states
            jax.ShapeDtypeStruct((T, batch, h_pad), jnp.float32),   # delayed outputs
            jax.ShapeDtypeStruct((batch, h_pad), jnp.float32),      # final inner
            jax.ShapeDtypeStruct((batch, h_pad), jnp.float32),      # final outer
        ],
        scratch_shapes=[pltpu.VMEM((batch_tile, h_pad), jnp.float32),
                        pltpu.VMEM((batch_tile, h_pad), jnp.float32)],
        compiler_params=pltpu.CompilerParams(
            dimension_semantics=("parallel", "arbitrary")),
    )(x_bf16, w_bf16, b, prev_inner, prev_outer)


# ---------------------------------------------------------------------------
# Thin stateful wrapper reproducing the nn.Module semantics.
# ---------------------------------------------------------------------------
class SpikingNeuronLayer:
    def __init__(self, key, n_inputs, n_hidden=100, decay_multiplier=0.9,
                 threshold=2.0, penalty_threshold=2.5, slice_outputs=True):
        self.n_inputs = n_inputs
        self.n_hidden = n_hidden
        self.h_pad = _round_up(n_hidden, 128)
        self.decay_multiplier = decay_multiplier
        self.threshold = threshold
        self.penalty_threshold = penalty_threshold
        # Keep padded (h_pad) widths downstream when possible; slicing to
        # n_hidden re-copies the outputs with masked partial-lane stores.
        self.slice_outputs = slice_outputs

        k_w, k_b = jax.random.split(key)
        # nn.Linear weight re-initialized with xavier_uniform_ (dim >= 2);
        # bias keeps the default nn.Linear init: U(-1/sqrt(fan_in), +...).
        xavier_bound = (6.0 / (n_inputs + n_hidden)) ** 0.5
        w = jax.random.uniform(k_w, (n_inputs, n_hidden), jnp.float32,
                               minval=-xavier_bound, maxval=xavier_bound)
        b_bound = 1.0 / (n_inputs ** 0.5)
        b = jax.random.uniform(k_b, (1, n_hidden), jnp.float32,
                               minval=-b_bound, maxval=b_bound)

        # Lane-dense, zero-padded parameters (padded columns contribute 0).
        self.w_pad = (jnp.zeros((n_inputs, self.h_pad), jnp.float32)
                      .at[:, :n_hidden].set(w).astype(jnp.bfloat16))
        self.b_pad = (jnp.zeros((1, self.h_pad), jnp.float32)
                      .at[:, :n_hidden].set(b))

        d, t, p = float(decay_multiplier), float(threshold), float(penalty_threshold)
        self._step_fn = jax.jit(
            lambda x, w_, b_, prev: spiking_step(
                x.astype(jnp.bfloat16), w_, b_, prev, d, t, p))
        self._seq_fn = jax.jit(
            lambda xs, w_, b_, pi, po: spiking_recurrence_fused(
                xs.astype(jnp.bfloat16), w_, b_, pi, po, d, t, p))

        self.reset_state()

    def reset_state(self):
        self.prev_inner_p = jnp.zeros((self.h_pad,), jnp.float32)
        self.prev_outer_p = jnp.zeros((self.h_pad,), jnp.float32)

    def _ensure_batched_state(self, batch):
        if self.prev_inner_p.ndim == 1:
            self.prev_inner_p = jnp.broadcast_to(
                self.prev_inner_p, (batch, self.h_pad))
            self.prev_outer_p = jnp.broadcast_to(
                self.prev_outer_p, (batch, self.h_pad))
        elif self.prev_inner_p.shape[0] != batch:
            raise ValueError("batch size changed mid-sequence; call reset_state()")

    def _maybe_slice(self, a):
        return a[..., :self.n_hidden] if self.slice_outputs else a

    def __call__(self, x):
        """Single time step — matches nn.Module.forward (delayed return)."""
        batch = x.shape[0]
        self._ensure_batched_state(batch)

        new_inner, new_outer = self._step_fn(
            x, self.w_pad, self.b_pad, self.prev_inner_p)

        delayed_state = self._maybe_slice(self.prev_inner_p)
        delayed_output = self._maybe_slice(self.prev_outer_p)
        self.prev_inner_p = new_inner
        self.prev_outer_p = new_outer
        return (delayed_state, delayed_output)

    def forward_sequence(self, xs):
        """Fused version of T successive forward() calls.

        xs: (T, batch, n_inputs).  Returns (states, outputs), each
        (T, batch, n_hidden): exactly what T calls to __call__ would return,
        and leaves the internal state identical to T calls.  One kernel.
        """
        T, batch, _ = xs.shape
        self._ensure_batched_state(batch)

        states, outputs, final_inner, final_outer = self._seq_fn(
            xs, self.w_pad, self.b_pad, self.prev_inner_p, self.prev_outer_p)

        self.prev_inner_p = final_inner
        self.prev_outer_p = final_outer
        return self._maybe_slice(states), self._maybe_slice(outputs)


# ---------------------------------------------------------------------------
# Pure-JAX reference (same bf16-matmul numerics) for correctness checking.
# ---------------------------------------------------------------------------
def _ref_sequence(xs, w_pad_bf16, b_pad, decay, thr, pen, n_hidden):
    T, batch, _ = xs.shape
    h_pad = w_pad_bf16.shape[1]
    inner = jnp.zeros((batch, h_pad), jnp.float32)
    outer = jnp.zeros((batch, h_pad), jnp.float32)
    states, outputs = [], []
    for t in range(T):
        states.append(inner[:, :n_hidden])
        outputs.append(outer[:, :n_hidden])
        exc = jnp.dot(xs[t].astype(jnp.bfloat16), w_pad_bf16,
                      preferred_element_type=jnp.float32) + b_pad
        new_inner = exc + inner * decay
        new_outer = jnp.maximum(new_inner - thr, 0.0)
        gate = (new_outer > 0.0).astype(jnp.float32)
        new_inner = new_inner - pen / thr * new_inner * gate
        inner, outer = new_inner, new_outer
    return jnp.stack(states), jnp.stack(outputs)


if __name__ == "__main__":
    key = jax.random.PRNGKey(0)
    k_param, k_x = jax.random.split(key)

    batch, n_inputs, n_hidden, T = 32, 16, 100, 8
    layer = SpikingNeuronLayer(k_param, n_inputs=n_inputs, n_hidden=n_hidden,
                               decay_multiplier=0.9, threshold=2.0,
                               penalty_threshold=2.5)
    xs = jax.random.normal(k_x, (T, batch, n_inputs), jnp.float32)

    # Fused path: ONE kernel (matmul fused into the chunked recurrence).
    seq_states, seq_outputs = layer.forward_sequence(xs)
    jax.block_until_ready((seq_states, seq_outputs))

    # Stateful step-by-step path (one fused matmul+update kernel per step).
    layer.reset_state()
    step_states, step_outputs = [], []
    for t in range(T):
        s, o = layer(xs[t])
        step_states.append(s)
        step_outputs.append(o)
    step_states = jnp.stack(step_states)
    step_outputs = jnp.stack(step_outputs)
    jax.block_until_ready((step_states, step_outputs))

    # Reference.
    ref_states, ref_outputs = _ref_sequence(
        xs, layer.w_pad, layer.b_pad, 0.9, 2.0, 2.5, n_hidden)

    assert seq_states.shape == (T, batch, n_hidden)
    assert seq_outputs.shape == (T, batch, n_hidden)
    assert step_states.shape == (T, batch, n_hidden)
    assert jnp.allclose(seq_states, ref_states, atol=1e-4, rtol=1e-4)
    assert jnp.allclose(seq_outputs, ref_outputs, atol=1e-4, rtol=1e-4)
    assert jnp.allclose(step_states, ref_states, atol=1e-4, rtol=1e-4)
    assert jnp.allclose(step_outputs, ref_outputs, atol=1e-4, rtol=1e-4)
    assert jnp.allclose(seq_states, step_states, atol=1e-5, rtol=1e-5)
    assert jnp.allclose(seq_outputs, step_outputs, atol=1e-5, rtol=1e-5)

    print("KERNEL_OK")
</pallas_src>

<mosaic_0001>
module attributes {stable_mosaic.version = 11 : i64} {
  func.func @_fused_recurrence_kernel(%arg0: i32, %arg1: i32, %arg2: memref<8x16x16xbf16, #tpu.memory_space<vmem>>, %arg3: memref<16x128xbf16, #tpu.memory_space<vmem>>, %arg4: memref<1x128xf32, #tpu.memory_space<vmem>>, %arg5: memref<16x128xf32, #tpu.memory_space<vmem>>, %arg6: memref<16x128xf32, #tpu.memory_space<vmem>>, %arg7: memref<8x16x128xf32, #tpu.memory_space<vmem>>, %arg8: memref<8x16x128xf32, #tpu.memory_space<vmem>>, %arg9: memref<16x128xf32, #tpu.memory_space<vmem>>, %arg10: memref<16x128xf32, #tpu.memory_space<vmem>>, %arg11: memref<16x128xf32, #tpu.memory_space<vmem>>, %arg12: memref<16x128xf32, #tpu.memory_space<vmem>>) attributes {dimension_semantics = [#tpu.dimension_semantics<parallel>, #tpu.dimension_semantics<arbitrary>], iteration_bounds = array<i64: 2, 1>, scalar_prefetch = 0 : i64, scratch_operands = 2 : i64, tpu.core_type = #tpu.core_type<tc>, window_params = [{transform_indices = @transform_0, window_bounds = array<i64: 8, 16, 16>}, {pipeline_mode = #tpu.pipeline_mode<synchronous>, transform_indices = @transform_1, window_bounds = array<i64: 16, 128>}, {pipeline_mode = #tpu.pipeline_mode<synchronous>, transform_indices = @transform_2, window_bounds = array<i64: 1, 128>}, {transform_indices = @transform_3, window_bounds = array<i64: 16, 128>}, {transform_indices = @transform_4, window_bounds = array<i64: 16, 128>}, {transform_indices = @transform_5, window_bounds = array<i64: 8, 16, 128>}, {transform_indices = @transform_6, window_bounds = array<i64: 8, 16, 128>}, {transform_indices = @transform_7, window_bounds = array<i64: 16, 128>}, {transform_indices = @transform_8, window_bounds = array<i64: 16, 128>}]} {
    %c0_i32 = arith.constant 0 : i32
    %0 = arith.cmpi eq, %arg1, %c0_i32 : i32
    %1 = arith.extui %0 : i1 to i32
    %c0_i32_0 = arith.constant 0 : i32
    %2 = arith.cmpi ne, %1, %c0_i32_0 : i32
    scf.if %2 {
      %c0_216 = arith.constant 0 : index
      %c0_217 = arith.constant 0 : index
      %271 = vector.load %arg5[%c0_216, %c0_217] : memref<16x128xf32, #tpu.memory_space<vmem>>, vector<16x128xf32>
      %c0_218 = arith.constant 0 : index
      %c0_219 = arith.constant 0 : index
      %272 = vector.load %arg11[%c0_218, %c0_219] : memref<16x128xf32, #tpu.memory_space<vmem>>, vector<16x128xf32>
      tpu.vector_store %arg11[%c0_218, %c0_219], %271 {strides = array<i32>} : memref<16x128xf32, #tpu.memory_space<vmem>>, vector<16x128xf32>,
      %c0_220 = arith.constant 0 : index
      %c0_221 = arith.constant 0 : index
      %273 = vector.load %arg6[%c0_220, %c0_221] : memref<16x128xf32, #tpu.memory_space<vmem>>, vector<16x128xf32>
      %c0_222 = arith.constant 0 : index
      %c0_223 = arith.constant 0 : index
      %274 = vector.load %arg12[%c0_222, %c0_223] : memref<16x128xf32, #tpu.memory_space<vmem>>, vector<16x128xf32>
      tpu.vector_store %arg12[%c0_222, %c0_223], %273 {strides = array<i32>} : memref<16x128xf32, #tpu.memory_space<vmem>>, vector<16x128xf32>,
    } else {
    }
    %c0_i32_1 = arith.constant 0 : i32
    %c0 = arith.constant 0 : index
    %c0_2 = arith.constant 0 : index
    %3 = vector.load %arg11[%c0, %c0_2] : memref<16x128xf32, #tpu.memory_space<vmem>>, vector<16x128xf32>
    %4 = arith.index_cast %c0_i32_1 : i32 to index
    %c0_3 = arith.constant 0 : index
    %c0_4 = arith.constant 0 : index
    %5 = vector.load %arg7[%4, %c0_3, %c0_4] : memref<8x16x128xf32, #tpu.memory_space<vmem>>, vector<1x16x128xf32>
    %6 = vector.shape_cast %5 : vector<1x16x128xf32> to vector<16x128xf32>
    %7 = vector.shape_cast %3 : vector<16x128xf32> to vector<1x16x128xf32>
    tpu.vector_store %arg7[%4, %c0_3, %c0_4], %7 {strides = array<i32>} : memref<8x16x128xf32, #tpu.memory_space<vmem>>, vector<1x16x128xf32>,
    %c0_5 = arith.constant 0 : index
    %c0_6 = arith.constant 0 : index
    %8 = vector.load %arg12[%c0_5, %c0_6] : memref<16x128xf32, #tpu.memory_space<vmem>>, vector<16x128xf32>
    %9 = arith.index_cast %c0_i32_1 : i32 to index
    %c0_7 = arith.constant 0 : index
    %c0_8 = arith.constant 0 : index
    %10 = vector.load %arg8[%9, %c0_7, %c0_8] : memref<8x16x128xf32, #tpu.memory_space<vmem>>, vector<1x16x128xf32>
    %11 = vector.shape_cast %10 : vector<1x16x128xf32> to vector<16x128xf32>
    %12 = vector.shape_cast %8 : vector<16x128xf32> to vector<1x16x128xf32>
    tpu.vector_store %arg8[%9, %c0_7, %c0_8], %12 {strides = array<i32>} : memref<8x16x128xf32, #tpu.memory_space<vmem>>, vector<1x16x128xf32>,
    %13 = arith.index_cast %c0_i32_1 : i32 to index
    %c0_9 = arith.constant 0 : index
    %c0_10 = arith.constant 0 : index
    %14 = vector.load %arg2[%13, %c0_9, %c0_10] : memref<8x16x16xbf16, #tpu.memory_space<vmem>>, vector<1x16x16xbf16>
    %15 = vector.shape_cast %14 : vector<1x16x16xbf16> to vector<16x16xbf16>
    %c0_11 = arith.constant 0 : index
    %c0_12 = arith.constant 0 : index
    %16 = vector.load %arg3[%c0_11, %c0_12] : memref<16x128xbf16, #tpu.memory_space<vmem>>, vector<16x128xbf16>
    %cst = arith.constant dense<0.000000e+00> : vector<16x128xf32>
    %17 = tpu.matmul %15, %16, %cst {dimension_numbers = #tpu.dot_dimension_numbers<[1], [0], [0], [1], [0, 0, 1, 1], [], []>} : vector<16x16xbf16>, vector<16x128xbf16>, vector<16x128xf32> -> vector<16x128xf32>
    %c0_13 = arith.constant 0 : index
    %c0_14 = arith.constant 0 : index
    %18 = vector.load %arg4[%c0_13, %c0_14] : memref<1x128xf32, #tpu.memory_space<vmem>>, vector<1x128xf32>
    %19 = vector.broadcast %18 : vector<1x128xf32> to vector<16x128xf32>
    %20 = arith.addf %17, %19 : vector<16x128xf32>
    %c0_15 = arith.constant 0 : index
    %c0_16 = arith.constant 0 : index
    %21 = vector.load %arg11[%c0_15, %c0_16] : memref<16x128xf32, #tpu.memory_space<vmem>>, vector<16x128xf32>
    %cst_17 = arith.constant 0.899999976 : f32
    %22 = vector.broadcast %cst_17 : f32 to vector<16x128xf32>
    %23 = arith.mulf %21, %22 : vector<16x128xf32>
    %24 = arith.addf %20, %23 : vector<16x128xf32>
    %cst_18 = arith.constant 2.000000e+00 : f32
    %25 = vector.broadcast %cst_18 : f32 to vector<16x128xf32>
    %26 = arith.subf %24, %25 : vector<16x128xf32>
    %cst_19 = arith.constant 0.000000e+00 : f32
    %27 = vector.broadcast %cst_19 : f32 to vector<16x128xf32>
    %28 = arith.maximumf %26, %27 : vector<16x128xf32>
    %cst_20 = arith.constant 0.000000e+00 : f32
    %29 = vector.broadcast %cst_20 : f32 to vector<16x128xf32>
    %30 = arith.cmpf ogt, %28, %29 : vector<16x128xf32>
    %cst_21 = arith.constant -2.500000e-01 : f32
    %31 = vector.broadcast %cst_21 : f32 to vector<16x128xf32>
    %32 = arith.mulf %24, %31 : vector<16x128xf32>
    %33 = arith.select %30, %32, %24 : vector<16x128xi1>, vector<16x128xf32>
    %c0_22 = arith.constant 0 : index
    %c0_23 = arith.constant 0 : index
    %34 = vector.load %arg11[%c0_22, %c0_23] : memref<16x128xf32, #tpu.memory_space<vmem>>, vector<16x128xf32>
    tpu.vector_store %arg11[%c0_22, %c0_23], %33 {strides = array<i32>} : memref<16x128xf32, #tpu.memory_space<vmem>>, vector<16x128xf32>,
    %c0_24 = arith.constant 0 : index
    %c0_25 = arith.constant 0 : index
    %35 = vector.load %arg12[%c0_24, %c0_25] : memref<16x128xf32, #tpu.memory_space<vmem>>, vector<16x128xf32>
    tpu.vector_store %arg12[%c0_24, %c0_25], %28 {strides = array<i32>} : memref<16x128xf32, #tpu.memory_space<vmem>>, vector<16x128xf32>,
    %c1_i32 = arith.constant 1 : i32
    %c0_26 = arith.constant 0 : index
    %c0_27 = arith.constant 0 : index
    %36 = vector.load %arg11[%c0_26, %c0_27] : memref<16x128xf32, #tpu.memory_space<vmem>>, vector<16x128xf32>
    %37 = arith.index_cast %c1_i32 : i32 to index
    %c0_28 = arith.constant 0 : index
    %c0_29 = arith.constant 0 : index
    %38 = vector.load %arg7[%37, %c0_28, %c0_29] : memref<8x16x128xf32, #tpu.memory_space<vmem>>, vector<1x16x128xf32>
    %39 = vector.shape_cast %38 : vector<1x16x128xf32> to vector<16x128xf32>
    %40 = vector.shape_cast %36 : vector<16x128xf32> to vector<1x16x128xf32>
    tpu.vector_store %arg7[%37, %c0_28, %c0_29], %40 {strides = array<i32>} : memref<8x16x128xf32, #tpu.memory_space<vmem>>, vector<1x16x128xf32>,
    %c0_30 = arith.constant 0 : index
    %c0_31 = arith.constant 0 : index
    %41 = vector.load %arg12[%c0_30, %c0_31] : memref<16x128xf32, #tpu.memory_space<vmem>>, vector<16x128xf32>
    %42 = arith.index_cast %c1_i32 : i32 to index
    %c0_32 = arith.constant 0 : index
    %c0_33 = arith.constant 0 : index
    %43 = vector.load %arg8[%42, %c0_32, %c0_33] : memref<8x16x128xf32, #tpu.memory_space<vmem>>, vector<1x16x128xf32>
    %44 = vector.shape_cast %43 : vector<1x16x128xf32> to vector<16x128xf32>
    %45 = vector.shape_cast %41 : vector<16x128xf32> to vector<1x16x128xf32>
    tpu.vector_store %arg8[%42, %c0_32, %c0_33], %45 {strides = array<i32>} : memref<8x16x128xf32, #tpu.memory_space<vmem>>, vector<1x16x128xf32>,
    %46 = arith.index_cast %c1_i32 : i32 to index
    %c0_34 = arith.constant 0 : index
    %c0_35 = arith.constant 0 : index
    %47 = vector.load %arg2[%46, %c0_34, %c0_35] : memref<8x16x16xbf16, #tpu.memory_space<vmem>>, vector<1x16x16xbf16>
    %48 = vector.shape_cast %47 : vector<1x16x16xbf16> to vector<16x16xbf16>
    %c0_36 = arith.constant 0 : index
    %c0_37 = arith.constant 0 : index
    %49 = vector.load %arg3[%c0_36, %c0_37] : memref<16x128xbf16, #tpu.memory_space<vmem>>, vector<16x128xbf16>
    %cst_38 = arith.constant dense<0.000000e+00> : vector<16x128xf32>
    %50 = tpu.matmul %48, %49, %cst_38 {dimension_numbers = #tpu.dot_dimension_numbers<[1], [0], [0], [1], [0, 0, 1, 1], [], []>} : vector<16x16xbf16>, vector<16x128xbf16>, vector<16x128xf32> -> vector<16x128xf32>
    %c0_39 = arith.constant 0 : index
    %c0_40 = arith.constant 0 : index
    %51 = vector.load %arg4[%c0_39, %c0_40] : memref<1x128xf32, #tpu.memory_space<vmem>>, vector<1x128xf32>
    %52 = vector.broadcast %51 : vector<1x128xf32> to vector<16x128xf32>
    %53 = arith.addf %50, %52 : vector<16x128xf32>
    %c0_41 = arith.constant 0 : index
    %c0_42 = arith.constant 0 : index
    %54 = vector.load %arg11[%c0_41, %c0_42] : memref<16x128xf32, #tpu.memory_space<vmem>>, vector<16x128xf32>
    %cst_43 = arith.constant 0.899999976 : f32
    %55 = vector.broadcast %cst_43 : f32 to vector<16x128xf32>
    %56 = arith.mulf %54, %55 : vector<16x128xf32>
    %57 = arith.addf %53, %56 : vector<16x128xf32>
    %cst_44 = arith.constant 2.000000e+00 : f32
    %58 = vector.broadcast %cst_44 : f32 to vector<16x128xf32>
    %59 = arith.subf %57, %58 : vector<16x128xf32>
    %cst_45 = arith.constant 0.000000e+00 : f32
    %60 = vector.broadcast %cst_45 : f32 to vector<16x128xf32>
    %61 = arith.maximumf %59, %60 : vector<16x128xf32>
    %cst_46 = arith.constant 0.000000e+00 : f32
    %62 = vector.broadcast %cst_46 : f32 to vector<16x128xf32>
    %63 = arith.cmpf ogt, %61, %62 : vector<16x128xf32>
    %cst_47 = arith.constant -2.500000e-01 : f32
    %64 = vector.broadcast %cst_47 : f32 to vector<16x128xf32>
    %65 = arith.mulf %57, %64 : vector<16x128xf32>
    %66 = arith.select %63, %65, %57 : vector<16x128xi1>, vector<16x128xf32>
    %c0_48 = arith.constant 0 : index
    %c0_49 = arith.constant 0 : index
    %67 = vector.load %arg11[%c0_48, %c0_49] : memref<16x128xf32, #tpu.memory_space<vmem>>, vector<16x128xf32>
    tpu.vector_store %arg11[%c0_48, %c0_49], %66 {strides = array<i32>} : memref<16x128xf32, #tpu.memory_space<vmem>>, vector<16x128xf32>,
    %c0_50 = arith.constant 0 : index
    %c0_51 = arith.constant 0 : index
    %68 = vector.load %arg12[%c0_50, %c0_51] : memref<16x128xf32, #tpu.memory_space<vmem>>, vector<16x128xf32>
    tpu.vector_store %arg12[%c0_50, %c0_51], %61 {strides = array<i32>} : memref<16x128xf32, #tpu.memory_space<vmem>>, vector<16x128xf32>,
    %c2_i32 = arith.constant 2 : i32
    %c0_52 = arith.constant 0 : index
    %c0_53 = arith.constant 0 : index
    %69 = vector.load %arg11[%c0_52, %c0_53] : memref<16x128xf32, #tpu.memory_space<vmem>>, vector<16x128xf32>
    %70 = arith.index_cast %c2_i32 : i32 to index
    %c0_54 = arith.constant 0 : index
    %c0_55 = arith.constant 0 : index
    %71 = vector.load %arg7[%70, %c0_54, %c0_55] : memref<8x16x128xf32, #tpu.memory_space<vmem>>, vector<1x16x128xf32>
    %72 = vector.shape_cast %71 : vector<1x16x128xf32> to vector<16x128xf32>
    %73 = vector.shape_cast %69 : vector<16x128xf32> to vector<1x16x128xf32>
    tpu.vector_store %arg7[%70, %c0_54, %c0_55], %73 {strides = array<i32>} : memref<8x16x128xf32, #tpu.memory_space<vmem>>, vector<1x16x128xf32>,
    %c0_56 = arith.constant 0 : index
    %c0_57 = arith.constant 0 : index
    %74 = vector.load %arg12[%c0_56, %c0_57] : memref<16x128xf32, #tpu.memory_space<vmem>>, vector<16x128xf32>
    %75 = arith.index_cast %c2_i32 : i32 to index
    %c0_58 = arith.constant 0 : index
    %c0_59 = arith.constant 0 : index
    %76 = vector.load %arg8[%75, %c0_58, %c0_59] : memref<8x16x128xf32, #tpu.memory_space<vmem>>, vector<1x16x128xf32>
    %77 = vector.shape_cast %76 : vector<1x16x128xf32> to vector<16x128xf32>
    %78 = vector.shape_cast %74 : vector<16x128xf32> to vector<1x16x128xf32>
    tpu.vector_store %arg8[%75, %c0_58, %c0_59], %78 {strides = array<i32>} : memref<8x16x128xf32, #tpu.memory_space<vmem>>, vector<1x16x128xf32>,
    %79 = arith.index_cast %c2_i32 : i32 to index
    %c0_60 = arith.constant 0 : index
    %c0_61 = arith.constant 0 : index
    %80 = vector.load %arg2[%79, %c0_60, %c0_61] : memref<8x16x16xbf16, #tpu.memory_space<vmem>>, vector<1x16x16xbf16>
    %81 = vector.shape_cast %80 : vector<1x16x16xbf16> to vector<16x16xbf16>
    %c0_62 = arith.constant 0 : index
    %c0_63 = arith.constant 0 : index
    %82 = vector.load %arg3[%c0_62, %c0_63] : memref<16x128xbf16, #tpu.memory_space<vmem>>, vector<16x128xbf16>
    %cst_64 = arith.constant dense<0.000000e+00> : vector<16x128xf32>
    %83 = tpu.matmul %81, %82, %cst_64 {dimension_numbers = #tpu.dot_dimension_numbers<[1], [0], [0], [1], [0, 0, 1, 1], [], []>} : vector<16x16xbf16>, vector<16x128xbf16>, vector<16x128xf32> -> vector<16x128xf32>
    %c0_65 = arith.constant 0 : index
    %c0_66 = arith.constant 0 : index
    %84 = vector.load %arg4[%c0_65, %c0_66] : memref<1x128xf32, #tpu.memory_space<vmem>>, vector<1x128xf32>
    %85 = vector.broadcast %84 : vector<1x128xf32> to vector<16x128xf32>
    %86 = arith.addf %83, %85 : vector<16x128xf32>
    %c0_67 = arith.constant 0 : index
    %c0_68 = arith.constant 0 : index
    %87 = vector.load %arg11[%c0_67, %c0_68] : memref<16x128xf32, #tpu.memory_space<vmem>>, vector<16x128xf32>
    %cst_69 = arith.constant 0.899999976 : f32
    %88 = vector.broadcast %cst_69 : f32 to vector<16x128xf32>
    %89 = arith.mulf %87, %88 : vector<16x128xf32>
    %90 = arith.addf %86, %89 : vector<16x128xf32>
    %cst_70 = arith.constant 2.000000e+00 : f32
    %91 = vector.broadcast %cst_70 : f32 to vector<16x128xf32>
    %92 = arith.subf %90, %91 : vector<16x128xf32>
    %cst_71 = arith.constant 0.000000e+00 : f32
    %93 = vector.broadcast %cst_71 : f32 to vector<16x128xf32>
    %94 = arith.maximumf %92, %93 : vector<16x128xf32>
    %cst_72 = arith.constant 0.000000e+00 : f32
    %95 = vector.broadcast %cst_72 : f32 to vector<16x128xf32>
    %96 = arith.cmpf ogt, %94, %95 : vector<16x128xf32>
    %cst_73 = arith.constant -2.500000e-01 : f32
    %97 = vector.broadcast %cst_73 : f32 to vector<16x128xf32>
    %98 = arith.mulf %90, %97 : vector<16x128xf32>
    %99 = arith.select %96, %98, %90 : vector<16x128xi1>, vector<16x128xf32>
    %c0_74 = arith.constant 0 : index
    %c0_75 = arith.constant 0 : index
    %100 = vector.load %arg11[%c0_74, %c0_75] : memref<16x128xf32, #tpu.memory_space<vmem>>, vector<16x128xf32>
    tpu.vector_store %arg11[%c0_74, %c0_75], %99 {strides = array<i32>} : memref<16x128xf32, #tpu.memory_space<vmem>>, vector<16x128xf32>,
    %c0_76 = arith.constant 0 : index
    %c0_77 = arith.constant 0 : index
    %101 = vector.load %arg12[%c0_76, %c0_77] : memref<16x128xf32, #tpu.memory_space<vmem>>, vector<16x128xf32>
    tpu.vector_store %arg12[%c0_76, %c0_77], %94 {strides = array<i32>} : memref<16x128xf32, #tpu.memory_space<vmem>>, vector<16x128xf32>,
    %c3_i32 = arith.constant 3 : i32
    %c0_78 = arith.constant 0 : index
    %c0_79 = arith.constant 0 : index
    %102 = vector.load %arg11[%c0_78, %c0_79] : memref<16x128xf32, #tpu.memory_space<vmem>>, vector<16x128xf32>
    %103 = arith.index_cast %c3_i32 : i32 to index
    %c0_80 = arith.constant 0 : index
    %c0_81 = arith.constant 0 : index
    %104 = vector.load %arg7[%103, %c0_80, %c0_81] : memref<8x16x128xf32, #tpu.memory_space<vmem>>, vector<1x16x128xf32>
    %105 = vector.shape_cast %104 : vector<1x16x128xf32> to vector<16x128xf32>
    %106 = vector.shape_cast %102 : vector<16x128xf32> to vector<1x16x128xf32>
    tpu.vector_store %arg7[%103, %c0_80, %c0_81], %106 {strides = array<i32>} : memref<8x16x128xf32, #tpu.memory_space<vmem>>, vector<1x16x128xf32>,
    %c0_82 = arith.constant 0 : index
    %c0_83 = arith.constant 0 : index
    %107 = vector.load %arg12[%c0_82, %c0_83] : memref<16x128xf32, #tpu.memory_space<vmem>>, vector<16x128xf32>
    %108 = arith.index_cast %c3_i32 : i32 to index
    %c0_84 = arith.constant 0 : index
    %c0_85 = arith.constant 0 : index
    %109 = vector.load %arg8[%108, %c0_84, %c0_85] : memref<8x16x128xf32, #tpu.memory_space<vmem>>, vector<1x16x128xf32>
    %110 = vector.shape_cast %109 : vector<1x16x128xf32> to vector<16x128xf32>
    %111 = vector.shape_cast %107 : vector<16x128xf32> to vector<1x16x128xf32>
    tpu.vector_store %arg8[%108, %c0_84, %c0_85], %111 {strides = array<i32>} : memref<8x16x128xf32, #tpu.memory_space<vmem>>, vector<1x16x128xf32>,
    %112 = arith.index_cast %c3_i32 : i32 to index
    %c0_86 = arith.constant 0 : index
    %c0_87 = arith.constant 0 : index
    %113 = vector.load %arg2[%112, %c0_86, %c0_87] : memref<8x16x16xbf16, #tpu.memory_space<vmem>>, vector<1x16x16xbf16>
    %114 = vector.shape_cast %113 : vector<1x16x16xbf16> to vector<16x16xbf16>
    %c0_88 = arith.constant 0 : index
    %c0_89 = arith.constant 0 : index
    %115 = vector.load %arg3[%c0_88, %c0_89] : memref<16x128xbf16, #tpu.memory_space<vmem>>, vector<16x128xbf16>
    %cst_90 = arith.constant dense<0.000000e+00> : vector<16x128xf32>
    %116 = tpu.matmul %114, %115, %cst_90 {dimension_numbers = #tpu.dot_dimension_numbers<[1], [0], [0], [1], [0, 0, 1, 1], [], []>} : vector<16x16xbf16>, vector<16x128xbf16>, vector<16x128xf32> -> vector<16x128xf32>
    %c0_91 = arith.constant 0 : index
    %c0_92 = arith.constant 0 : index
    %117 = vector.load %arg4[%c0_91, %c0_92] : memref<1x128xf32, #tpu.memory_space<vmem>>, vector<1x128xf32>
    %118 = vector.broadcast %117 : vector<1x128xf32> to vector<16x128xf32>
    %119 = arith.addf %116, %118 : vector<16x128xf32>
    %c0_93 = arith.constant 0 : index
    %c0_94 = arith.constant 0 : index
    %120 = vector.load %arg11[%c0_93, %c0_94] : memref<16x128xf32, #tpu.memory_space<vmem>>, vector<16x128xf32>
    %cst_95 = arith.constant 0.899999976 : f32
    %121 = vector.broadcast %cst_95 : f32 to vector<16x128xf32>
    %122 = arith.mulf %120, %121 : vector<16x128xf32>
    %123 = arith.addf %119, %122 : vector<16x128xf32>
    %cst_96 = arith.constant 2.000000e+00 : f32
    %124 = vector.broadcast %cst_96 : f32 to vector<16x128xf32>
    %125 = arith.subf %123, %124 : vector<16x128xf32>
    %cst_97 = arith.constant 0.000000e+00 : f32
    %126 = vector.broadcast %cst_97 : f32 to vector<16x128xf32>
    %127 = arith.maximumf %125, %126 : vector<16x128xf32>
    %cst_98 = arith.constant 0.000000e+00 : f32
    %128 = vector.broadcast %cst_98 : f32 to vector<16x128xf32>
    %129 = arith.cmpf ogt, %127, %128 : vector<16x128xf32>
    %cst_99 = arith.constant -2.500000e-01 : f32
    %130 = vector.broadcast %cst_99 : f32 to vector<16x128xf32>
    %131 = arith.mulf %123, %130 : vector<16x128xf32>
    %132 = arith.select %129, %131, %123 : vector<16x128xi1>, vector<16x128xf32>
    %c0_100 = arith.constant 0 : index
    %c0_101 = arith.constant 0 : index
    %133 = vector.load %arg11[%c0_100, %c0_101] : memref<16x128xf32, #tpu.memory_space<vmem>>, vector<16x128xf32>
    tpu.vector_store %arg11[%c0_100, %c0_101], %132 {strides = array<i32>} : memref<16x128xf32, #tpu.memory_space<vmem>>, vector<16x128xf32>,
    %c0_102 = arith.constant 0 : index
    %c0_103 = arith.constant 0 : index
    %134 = vector.load %arg12[%c0_102, %c0_103] : memref<16x128xf32, #tpu.memory_space<vmem>>, vector<16x128xf32>
    tpu.vector_store %arg12[%c0_102, %c0_103], %127 {strides = array<i32>} : memref<16x128xf32, #tpu.memory_space<vmem>>, vector<16x128xf32>,
    %c4_i32 = arith.constant 4 : i32
    %c0_104 = arith.constant 0 : index
    %c0_105 = arith.constant 0 : index
    %135 = vector.load %arg11[%c0_104, %c0_105] : memref<16x128xf32, #tpu.memory_space<vmem>>, vector<16x128xf32>
    %136 = arith.index_cast %c4_i32 : i32 to index
    %c0_106 = arith.constant 0 : index
    %c0_107 = arith.constant 0 : index
    %137 = vector.load %arg7[%136, %c0_106, %c0_107] : memref<8x16x128xf32, #tpu.memory_space<vmem>>, vector<1x16x128xf32>
    %138 = vector.shape_cast %137 : vector<1x16x128xf32> to vector<16x128xf32>
    %139 = vector.shape_cast %135 : vector<16x128xf32> to vector<1x16x128xf32>
    tpu.vector_store %arg7[%136, %c0_106, %c0_107], %139 {strides = array<i32>} : memref<8x16x128xf32, #tpu.memory_space<vmem>>, vector<1x16x128xf32>,
    %c0_108 = arith.constant 0 : index
    %c0_109 = arith.constant 0 : index
    %140 = vector.load %arg12[%c0_108, %c0_109] : memref<16x128xf32, #tpu.memory_space<vmem>>, vector<16x128xf32>
    %141 = arith.index_cast %c4_i32 : i32 to index
    %c0_110 = arith.constant 0 : index
    %c0_111 = arith.constant 0 : index
    %142 = vector.load %arg8[%141, %c0_110, %c0_111] : memref<8x16x128xf32, #tpu.memory_space<vmem>>, vector<1x16x128xf32>
    %143 = vector.shape_cast %142 : vector<1x16x128xf32> to vector<16x128xf32>
    %144 = vector.shape_cast %140 : vector<16x128xf32> to vector<1x16x128xf32>
    tpu.vector_store %arg8[%141, %c0_110, %c0_111], %144 {strides = array<i32>} : memref<8x16x128xf32, #tpu.memory_space<vmem>>, vector<1x16x128xf32>,
    %145 = arith.index_cast %c4_i32 : i32 to index
    %c0_112 = arith.constant 0 : index
    %c0_113 = arith.constant 0 : index
    %146 = vector.load %arg2[%145, %c0_112, %c0_113] : memref<8x16x16xbf16, #tpu.memory_space<vmem>>, vector<1x16x16xbf16>
    %147 = vector.shape_cast %146 : vector<1x16x16xbf16> to vector<16x16xbf16>
    %c0_114 = arith.constant 0 : index
    %c0_115 = arith.constant 0 : index
    %148 = vector.load %arg3[%c0_114, %c0_115] : memref<16x128xbf16, #tpu.memory_space<vmem>>, vector<16x128xbf16>
    %cst_116 = arith.constant dense<0.000000e+00> : vector<16x128xf32>
    %149 = tpu.matmul %147, %148, %cst_116 {dimension_numbers = #tpu.dot_dimension_numbers<[1], [0], [0], [1], [0, 0, 1, 1], [], []>} : vector<16x16xbf16>, vector<16x128xbf16>, vector<16x128xf32> -> vector<16x128xf32>
    %c0_117 = arith.constant 0 : index
    %c0_118 = arith.constant 0 : index
    %150 = vector.load %arg4[%c0_117, %c0_118] : memref<1x128xf32, #tpu.memory_space<vmem>>, vector<1x128xf32>
    %151 = vector.broadcast %150 : vector<1x128xf32> to vector<16x128xf32>
    %152 = arith.addf %149, %151 : vector<16x128xf32>
    %c0_119 = arith.constant 0 : index
    %c0_120 = arith.constant 0 : index
    %153 = vector.load %arg11[%c0_119, %c0_120] : memref<16x128xf32, #tpu.memory_space<vmem>>, vector<16x128xf32>
    %cst_121 = arith.constant 0.899999976 : f32
    %154 = vector.broadcast %cst_121 : f32 to vector<16x128xf32>
    %155 = arith.mulf %153, %154 : vector<16x128xf32>
    %156 = arith.addf %152, %155 : vector<16x128xf32>
    %cst_122 = arith.constant 2.000000e+00 : f32
    %157 = vector.broadcast %cst_122 : f32 to vector<16x128xf32>
    %158 = arith.subf %156, %157 : vector<16x128xf32>
    %cst_123 = arith.constant 0.000000e+00 : f32
    %159 = vector.broadcast %cst_123 : f32 to vector<16x128xf32>
    %160 = arith.maximumf %158, %159 : vector<16x128xf32>
    %cst_124 = arith.constant 0.000000e+00 : f32
    %161 = vector.broadcast %cst_124 : f32 to vector<16x128xf32>
    %162 = arith.cmpf ogt, %160, %161 : vector<16x128xf32>
    %cst_125 = arith.constant -2.500000e-01 : f32
    %163 = vector.broadcast %cst_125 : f32 to vector<16x128xf32>
    %164 = arith.mulf %156, %163 : vector<16x128xf32>
    %165 = arith.select %162, %164, %156 : vector<16x128xi1>, vector<16x128xf32>
    %c0_126 = arith.constant 0 : index
    %c0_127 = arith.constant 0 : index
    %166 = vector.load %arg11[%c0_126, %c0_127] : memref<16x128xf32, #tpu.memory_space<vmem>>, vector<16x128xf32>
    tpu.vector_store %arg11[%c0_126, %c0_127], %165 {strides = array<i32>} : memref<16x128xf32, #tpu.memory_space<vmem>>, vector<16x128xf32>,
    %c0_128 = arith.constant 0 : index
    %c0_129 = arith.constant 0 : index
    %167 = vector.load %arg12[%c0_128, %c0_129] : memref<16x128xf32, #tpu.memory_space<vmem>>, vector<16x128xf32>
    tpu.vector_store %arg12[%c0_128, %c0_129], %160 {strides = array<i32>} : memref<16x128xf32, #tpu.memory_space<vmem>>, vector<16x128xf32>,
    %c5_i32 = arith.constant 5 : i32
    %c0_130 = arith.constant 0 : index
    %c0_131 = arith.constant 0 : index
    %168 = vector.load %arg11[%c0_130, %c0_131] : memref<16x128xf32, #tpu.memory_space<vmem>>, vector<16x128xf32>
    %169 = arith.index_cast %c5_i32 : i32 to index
    %c0_132 = arith.constant 0 : index
    %c0_133 = arith.constant 0 : index
    %170 = vector.load %arg7[%169, %c0_132, %c0_133] : memref<8x16x128xf32, #tpu.memory_space<vmem>>, vector<1x16x128xf32>
    %171 = vector.shape_cast %170 : vector<1x16x128xf32> to vector<16x128xf32>
    %172 = vector.shape_cast %168 : vector<16x128xf32> to vector<1x16x128xf32>
    tpu.vector_store %arg7[%169, %c0_132, %c0_133], %172 {strides = array<i32>} : memref<8x16x128xf32, #tpu.memory_space<vmem>>, vector<1x16x128xf32>,
    %c0_134 = arith.constant 0 : index
    %c0_135 = arith.constant 0 : index
    %173 = vector.load %arg12[%c0_134, %c0_135] : memref<16x128xf32, #tpu.memory_space<vmem>>, vector<16x128xf32>
    %174 = arith.index_cast %c5_i32 : i32 to index
    %c0_136 = arith.constant 0 : index
    %c0_137 = arith.constant 0 : index
    %175 = vector.load %arg8[%174, %c0_136, %c0_137] : memref<8x16x128xf32, #tpu.memory_space<vmem>>, vector<1x16x128xf32>
    %176 = vector.shape_cast %175 : vector<1x16x128xf32> to vector<16x128xf32>
    %177 = vector.shape_cast %173 : vector<16x128xf32> to vector<1x16x128xf32>
    tpu.vector_store %arg8[%174, %c0_136, %c0_137], %177 {strides = array<i32>} : memref<8x16x128xf32, #tpu.memory_space<vmem>>, vector<1x16x128xf32>,
    %178 = arith.index_cast %c5_i32 : i32 to index
    %c0_138 = arith.constant 0 : index
    %c0_139 = arith.constant 0 : index
    %179 = vector.load %arg2[%178, %c0_138, %c0_139] : memref<8x16x16xbf16, #tpu.memory_space<vmem>>, vector<1x16x16xbf16>
    %180 = vector.shape_cast %179 : vector<1x16x16xbf16> to vector<16x16xbf16>
    %c0_140 = arith.constant 0 : index
    %c0_141 = arith.constant 0 : index
    %181 = vector.load %arg3[%c0_140, %c0_141] : memref<16x128xbf16, #tpu.memory_space<vmem>>, vector<16x128xbf16>
    %cst_142 = arith.constant dense<0.000000e+00> : vector<16x128xf32>
    %182 = tpu.matmul %180, %181, %cst_142 {dimension_numbers = #tpu.dot_dimension_numbers<[1], [0], [0], [1], [0, 0, 1, 1], [], []>} : vector<16x16xbf16>, vector<16x128xbf16>, vector<16x128xf32> -> vector<16x128xf32>
    %c0_143 = arith.constant 0 : index
    %c0_144 = arith.constant 0 : index
    %183 = vector.load %arg4[%c0_143, %c0_144] : memref<1x128xf32, #tpu.memory_space<vmem>>, vector<1x128xf32>
    %184 = vector.broadcast %183 : vector<1x128xf32> to vector<16x128xf32>
    %185 = arith.addf %182, %184 : vector<16x128xf32>
    %c0_145 = arith.constant 0 : index
    %c0_146 = arith.constant 0 : index
    %186 = vector.load %arg11[%c0_145, %c0_146] : memref<16x128xf32, #tpu.memory_space<vmem>>, vector<16x128xf32>
    %cst_147 = arith.constant 0.899999976 : f32
    %187 = vector.broadcast %cst_147 : f32 to vector<16x128xf32>
    %188 = arith.mulf %186, %187 : vector<16x128xf32>
    %189 = arith.addf %185, %188 : vector<16x128xf32>
    %cst_148 = arith.constant 2.000000e+00 : f32
    %190 = vector.broadcast %cst_148 : f32 to vector<16x128xf32>
    %191 = arith.subf %189, %190 : vector<16x128xf32>
    %cst_149 = arith.constant 0.000000e+00 : f32
    %192 = vector.broadcast %cst_149 : f32 to vector<16x128xf32>
    %193 = arith.maximumf %191, %192 : vector<16x128xf32>
    %cst_150 = arith.constant 0.000000e+00 : f32
    %194 = vector.broadcast %cst_150 : f32 to vector<16x128xf32>
    %195 = arith.cmpf ogt, %193, %194 : vector<16x128xf32>
    %cst_151 = arith.constant -2.500000e-01 : f32
    %196 = vector.broadcast %cst_151 : f32 to vector<16x128xf32>
    %197 = arith.mulf %189, %196 : vector<16x128xf32>
    %198 = arith.select %195, %197, %189 : vector<16x128xi1>, vector<16x128xf32>
    %c0_152 = arith.constant 0 : index
    %c0_153 = arith.constant 0 : index
    %199 = vector.load %arg11[%c0_152, %c0_153] : memref<16x128xf32, #tpu.memory_space<vmem>>, vector<16x128xf32>
    tpu.vector_store %arg11[%c0_152, %c0_153], %198 {strides = array<i32>} : memref<16x128xf32, #tpu.memory_space<vmem>>, vector<16x128xf32>,
    %c0_154 = arith.constant 0 : index
    %c0_155 = arith.constant 0 : index
    %200 = vector.load %arg12[%c0_154, %c0_155] : memref<16x128xf32, #tpu.memory_space<vmem>>, vector<16x128xf32>
    tpu.vector_store %arg12[%c0_154, %c0_155], %193 {strides = array<i32>} : memref<16x128xf32, #tpu.memory_space<vmem>>, vector<16x128xf32>,
    %c6_i32 = arith.constant 6 : i32
    %c0_156 = arith.constant 0 : index
    %c0_157 = arith.constant 0 : index
    %201 = vector.load %arg11[%c0_156, %c0_157] : memref<16x128xf32, #tpu.memory_space<vmem>>, vector<16x128xf32>
    %202 = arith.index_cast %c6_i32 : i32 to index
    %c0_158 = arith.constant 0 : index
    %c0_159 = arith.constant 0 : index
    %203 = vector.load %arg7[%202, %c0_158, %c0_159] : memref<8x16x128xf32, #tpu.memory_space<vmem>>, vector<1x16x128xf32>
    %204 = vector.shape_cast %203 : vector<1x16x128xf32> to vector<16x128xf32>
    %205 = vector.shape_cast %201 : vector<16x128xf32> to vector<1x16x128xf32>
    tpu.vector_store %arg7[%202, %c0_158, %c0_159], %205 {strides = array<i32>} : memref<8x16x128xf32, #tpu.memory_space<vmem>>, vector<1x16x128xf32>,
    %c0_160 = arith.constant 0 : index
    %c0_161 = arith.constant 0 : index
    %206 = vector.load %arg12[%c0_160, %c0_161] : memref<16x128xf32, #tpu.memory_space<vmem>>, vector<16x128xf32>
    %207 = arith.index_cast %c6_i32 : i32 to index
    %c0_162 = arith.constant 0 : index
    %c0_163 = arith.constant 0 : index
    %208 = vector.load %arg8[%207, %c0_162, %c0_163] : memref<8x16x128xf32, #tpu.memory_space<vmem>>, vector<1x16x128xf32>
    %209 = vector.shape_cast %208 : vector<1x16x128xf32> to vector<16x128xf32>
    %210 = vector.shape_cast %206 : vector<16x128xf32> to vector<1x16x128xf32>
    tpu.vector_store %arg8[%207, %c0_162, %c0_163], %210 {strides = array<i32>} : memref<8x16x128xf32, #tpu.memory_space<vmem>>, vector<1x16x128xf32>,
    %211 = arith.index_cast %c6_i32 : i32 to index
    %c0_164 = arith.constant 0 : index
    %c0_165 = arith.constant 0 : index
    %212 = vector.load %arg2[%211, %c0_164, %c0_165] : memref<8x16x16xbf16, #tpu.memory_space<vmem>>, vector<1x16x16xbf16>
    %213 = vector.shape_cast %212 : vector<1x16x16xbf16> to vector<16x16xbf16>
    %c0_166 = arith.constant 0 : index
    %c0_167 = arith.constant 0 : index
    %214 = vector.load %arg3[%c0_166, %c0_167] : memref<16x128xbf16, #tpu.memory_space<vmem>>, vector<16x128xbf16>
    %cst_168 = arith.constant dense<0.000000e+00> : vector<16x128xf32>
    %215 = tpu.matmul %213, %214, %cst_168 {dimension_numbers = #tpu.dot_dimension_numbers<[1], [0], [0], [1], [0, 0, 1, 1], [], []>} : vector<16x16xbf16>, vector<16x128xbf16>, vector<16x128xf32> -> vector<16x128xf32>
    %c0_169 = arith.constant 0 : index
    %c0_170 = arith.constant 0 : index
    %216 = vector.load %arg4[%c0_169, %c0_170] : memref<1x128xf32, #tpu.memory_space<vmem>>, vector<1x128xf32>
    %217 = vector.broadcast %216 : vector<1x128xf32> to vector<16x128xf32>
    %218 = arith.addf %215, %217 : vector<16x128xf32>
    %c0_171 = arith.constant 0 : index
    %c0_172 = arith.constant 0 : index
    %219 = vector.load %arg11[%c0_171, %c0_172] : memref<16x128xf32, #tpu.memory_space<vmem>>, vector<16x128xf32>
    %cst_173 = arith.constant 0.899999976 : f32
    %220 = vector.broadcast %cst_173 : f32 to vector<16x128xf32>
    %221 = arith.mulf %219, %220 : vector<16x128xf32>
    %222 = arith.addf %218, %221 : vector<16x128xf32>
    %cst_174 = arith.constant 2.000000e+00 : f32
    %223 = vector.broadcast %cst_174 : f32 to vector<16x128xf32>
    %224 = arith.subf %222, %223 : vector<16x128xf32>
    %cst_175 = arith.constant 0.000000e+00 : f32
    %225 = vector.broadcast %cst_175 : f32 to vector<16x128xf32>
    %226 = arith.maximumf %224, %225 : vector<16x128xf32>
    %cst_176 = arith.constant 0.000000e+00 : f32
    %227 = vector.broadcast %cst_176 : f32 to vector<16x128xf32>
    %228 = arith.cmpf ogt, %226, %227 : vector<16x128xf32>
    %cst_177 = arith.constant -2.500000e-01 : f32
    %229 = vector.broadcast %cst_177 : f32 to vector<16x128xf32>
    %230 = arith.mulf %222, %229 : vector<16x128xf32>
    %231 = arith.select %228, %230, %222 : vector<16x128xi1>, vector<16x128xf32>
    %c0_178 = arith.constant 0 : index
    %c0_179 = arith.constant 0 : index
    %232 = vector.load %arg11[%c0_178, %c0_179] : memref<16x128xf32, #tpu.memory_space<vmem>>, vector<16x128xf32>
    tpu.vector_store %arg11[%c0_178, %c0_179], %231 {strides = array<i32>} : memref<16x128xf32, #tpu.memory_space<vmem>>, vector<16x128xf32>,
    %c0_180 = arith.constant 0 : index
    %c0_181 = arith.constant 0 : index
    %233 = vector.load %arg12[%c0_180, %c0_181] : memref<16x128xf32, #tpu.memory_space<vmem>>, vector<16x128xf32>
    tpu.vector_store %arg12[%c0_180, %c0_181], %226 {strides = array<i32>} : memref<16x128xf32, #tpu.memory_space<vmem>>, vector<16x128xf32>,
    %c7_i32 = arith.constant 7 : i32
    %c0_182 = arith.constant 0 : index
    %c0_183 = arith.constant 0 : index
    %234 = vector.load %arg11[%c0_182, %c0_183] : memref<16x128xf32, #tpu.memory_space<vmem>>, vector<16x128xf32>
    %235 = arith.index_cast %c7_i32 : i32 to index
    %c0_184 = arith.constant 0 : index
    %c0_185 = arith.constant 0 : index
    %236 = vector.load %arg7[%235, %c0_184, %c0_185] : memref<8x16x128xf32, #tpu.memory_space<vmem>>, vector<1x16x128xf32>
    %237 = vector.shape_cast %236 : vector<1x16x128xf32> to vector<16x128xf32>
    %238 = vector.shape_cast %234 : vector<16x128xf32> to vector<1x16x128xf32>
    tpu.vector_store %arg7[%235, %c0_184, %c0_185], %238 {strides = array<i32>} : memref<8x16x128xf32, #tpu.memory_space<vmem>>, vector<1x16x128xf32>,
    %c0_186 = arith.constant 0 : index
    %c0_187 = arith.constant 0 : index
    %239 = vector.load %arg12[%c0_186, %c0_187] : memref<16x128xf32, #tpu.memory_space<vmem>>, vector<16x128xf32>
    %240 = arith.index_cast %c7_i32 : i32 to index
    %c0_188 = arith.constant 0 : index
    %c0_189 = arith.constant 0 : index
    %241 = vector.load %arg8[%240, %c0_188, %c0_189] : memref<8x16x128xf32, #tpu.memory_space<vmem>>, vector<1x16x128xf32>
    %242 = vector.shape_cast %241 : vector<1x16x128xf32> to vector<16x128xf32>
    %243 = vector.shape_cast %239 : vector<16x128xf32> to vector<1x16x128xf32>
    tpu.vector_store %arg8[%240, %c0_188, %c0_189], %243 {strides = array<i32>} : memref<8x16x128xf32, #tpu.memory_space<vmem>>, vector<1x16x128xf32>,
    %244 = arith.index_cast %c7_i32 : i32 to index
    %c0_190 = arith.constant 0 : index
    %c0_191 = arith.constant 0 : index
    %245 = vector.load %arg2[%244, %c0_190, %c0_191] : memref<8x16x16xbf16, #tpu.memory_space<vmem>>, vector<1x16x16xbf16>
    %246 = vector.shape_cast %245 : vector<1x16x16xbf16> to vector<16x16xbf16>
    %c0_192 = arith.constant 0 : index
    %c0_193 = arith.constant 0 : index
    %247 = vector.load %arg3[%c0_192, %c0_193] : memref<16x128xbf16, #tpu.memory_space<vmem>>, vector<16x128xbf16>
    %cst_194 = arith.constant dense<0.000000e+00> : vector<16x128xf32>
    %248 = tpu.matmul %246, %247, %cst_194 {dimension_numbers = #tpu.dot_dimension_numbers<[1], [0], [0], [1], [0, 0, 1, 1], [], []>} : vector<16x16xbf16>, vector<16x128xbf16>, vector<16x128xf32> -> vector<16x128xf32>
    %c0_195 = arith.constant 0 : index
    %c0_196 = arith.constant 0 : index
    %249 = vector.load %arg4[%c0_195, %c0_196] : memref<1x128xf32, #tpu.memory_space<vmem>>, vector<1x128xf32>
    %250 = vector.broadcast %249 : vector<1x128xf32> to vector<16x128xf32>
    %251 = arith.addf %248, %250 : vector<16x128xf32>
    %c0_197 = arith.constant 0 : index
    %c0_198 = arith.constant 0 : index
    %252 = vector.load %arg11[%c0_197, %c0_198] : memref<16x128xf32, #tpu.memory_space<vmem>>, vector<16x128xf32>
    %cst_199 = arith.constant 0.899999976 : f32
    %253 = vector.broadcast %cst_199 : f32 to vector<16x128xf32>
    %254 = arith.mulf %252, %253 : vector<16x128xf32>
    %255 = arith.addf %251, %254 : vector<16x128xf32>
    %cst_200 = arith.constant 2.000000e+00 : f32
    %256 = vector.broadcast %cst_200 : f32 to vector<16x128xf32>
    %257 = arith.subf %255, %256 : vector<16x128xf32>
    %cst_201 = arith.constant 0.000000e+00 : f32
    %258 = vector.broadcast %cst_201 : f32 to vector<16x128xf32>
    %259 = arith.maximumf %257, %258 : vector<16x128xf32>
    %cst_202 = arith.constant 0.000000e+00 : f32
    %260 = vector.broadcast %cst_202 : f32 to vector<16x128xf32>
    %261 = arith.cmpf ogt, %259, %260 : vector<16x128xf32>
    %cst_203 = arith.constant -2.500000e-01 : f32
    %262 = vector.broadcast %cst_203 : f32 to vector<16x128xf32>
    %263 = arith.mulf %255, %262 : vector<16x128xf32>
    %264 = arith.select %261, %263, %255 : vector<16x128xi1>, vector<16x128xf32>
    %c0_204 = arith.constant 0 : index
    %c0_205 = arith.constant 0 : index
    %265 = vector.load %arg11[%c0_204, %c0_205] : memref<16x128xf32, #tpu.memory_space<vmem>>, vector<16x128xf32>
    tpu.vector_store %arg11[%c0_204, %c0_205], %264 {strides = array<i32>} : memref<16x128xf32, #tpu.memory_space<vmem>>, vector<16x128xf32>,
    %c0_206 = arith.constant 0 : index
    %c0_207 = arith.constant 0 : index
    %266 = vector.load %arg12[%c0_206, %c0_207] : memref<16x128xf32, #tpu.memory_space<vmem>>, vector<16x128xf32>
    tpu.vector_store %arg12[%c0_206, %c0_207], %259 {strides = array<i32>} : memref<16x128xf32, #tpu.memory_space<vmem>>, vector<16x128xf32>,
    %c8_i32 = arith.constant 8 : i32
    %c0_208 = arith.constant 0 : index
    %c0_209 = arith.constant 0 : index
    %267 = vector.load %arg11[%c0_208, %c0_209] : memref<16x128xf32, #tpu.memory_space<vmem>>, vector<16x128xf32>
    %c0_210 = arith.constant 0 : index
    %c0_211 = arith.constant 0 : index
    %268 = vector.load %arg9[%c0_210, %c0_211] : memref<16x128xf32, #tpu.memory_space<vmem>>, vector<16x128xf32>
    tpu.vector_store %arg9[%c0_210, %c0_211], %267 {strides = array<i32>} : memref<16x128xf32, #tpu.memory_space<vmem>>, vector<16x128xf32>,
    %c0_212 = arith.constant 0 : index
    %c0_213 = arith.constant 0 : index
    %269 = vector.load %arg12[%c0_212, %c0_213] : memref<16x128xf32, #tpu.memory_space<vmem>>, vector<16x128xf32>
    %c0_214 = arith.constant 0 : index
    %c0_215 = arith.constant 0 : index
    %270 = vector.load %arg10[%c0_214, %c0_215] : memref<16x128xf32, #tpu.memory_space<vmem>>, vector<16x128xf32>
    tpu.vector_store %arg10[%c0_214, %c0_215], %269 {strides = array<i32>} : memref<16x128xf32, #tpu.memory_space<vmem>>, vector<16x128xf32>,
    return
  }
  func.func @transform_0(%arg0: i32, %arg1: i32) -> (i32, i32, i32) {
    %c0_i32 = arith.constant 0 : i32
    %c0_i32_0 = arith.constant 0 : i32
    return %arg1, %arg0, %c0_i32 : i32, i32, i32
  }
  func.func @transform_1(%arg0: i32, %arg1: i32) -> (i32, i32) {
    %c0_i32 = arith.constant 0 : i32
    %c0_i32_0 = arith.constant 0 : i32
    %c0_i32_1 = arith.constant 0 : i32
    return %c0_i32, %c0_i32_0 : i32, i32
  }
  func.func @transform_2(%arg0: i32, %arg1: i32) -> (i32, i32) {
    %c0_i32 = arith.constant 0 : i32
    %c0_i32_0 = arith.constant 0 : i32
    %c0_i32_1 = arith.constant 0 : i32
    return %c0_i32, %c0_i32_0 : i32, i32
  }
  func.func @transform_3(%arg0: i32, %arg1: i32) -> (i32, i32) {
    %c0_i32 = arith.constant 0 : i32
    %c0_i32_0 = arith.constant 0 : i32
    return %arg0, %c0_i32 : i32, i32
  }
  func.func @transform_4(%arg0: i32, %arg1: i32) -> (i32, i32) {
    %c0_i32 = arith.constant 0 : i32
    %c0_i32_0 = arith.constant 0 : i32
    return %arg0, %c0_i32 : i32, i32
  }
  func.func @transform_5(%arg0: i32, %arg1: i32) -> (i32, i32, i32) {
    %c0_i32 = arith.constant 0 : i32
    %c0_i32_0 = arith.constant 0 : i32
    return %arg1, %arg0, %c0_i32 : i32, i32, i32
  }
  func.func @transform_6(%arg0: i32, %arg1: i32) -> (i32, i32, i32) {
    %c0_i32 = arith.constant 0 : i32
    %c0_i32_0 = arith.constant 0 : i32
    return %arg1, %arg0, %c0_i32 : i32, i32, i32
  }
  func.func @transform_7(%arg0: i32, %arg1: i32) -> (i32, i32) {
    %c0_i32 = arith.constant 0 : i32
    %c0_i32_0 = arith.constant 0 : i32
    return %arg0, %c0_i32 : i32, i32
  }
  func.func @transform_8(%arg0: i32, %arg1: i32) -> (i32, i32) {
    %c0_i32 = arith.constant 0 : i32
    %c0_i32_0 = arith.constant 0 : i32
    return %arg0, %c0_i32 : i32, i32
  }
}

</mosaic_0001>

<llo_original>
// kernel: _lambda_.1
$region0: #{_lambda_.1}
  #allocation0 [shape = 'u32[]', space=smem, size = 0x4, offset = 0x4, fixed_abs, tag = 'smem constant byte address 0x4 - core index']
  #allocation1 [shape = 'u32[144,128]{1,0:T(1,128)}', space=vmem, size = 0x12000, scoped, tag = 'internal scratch']
  #allocation2 [shape = 'f32[16,128]{1,0:T(8,128)}', space=vmem, size = 0x2000, scoped, tag = 'scratch operand']
  #allocation3 [shape = 'f32[16,128]{1,0:T(8,128)}', space=vmem, size = 0x2000, scoped, tag = 'scratch operand']
  #allocation12 [shape = 's32[]', space=sflag, size = 0x4, offset = 0, fixed_abs, tag = 'sflag constant byte address 0x0 - dummy sync flag']
  #allocation14 [shape = 's32[]', space=sflag, size = 0x4, offset = 0, fixed_abs, tag = 'sflag constant byte address 0x0 - dummy sync flag']
  %s0 = inlined_call_operand.vmem [shape: bf16[8,32,16], index: 0, kind: input, shape index: {}]
  %s1 = inlined_call_operand.vmem [shape: bf16[16,128], index: 1, kind: input, shape index: {}]
  %s2 = inlined_call_operand.vmem [shape: f32[1,128], index: 2, kind: input, shape index: {}]
  %s3 = inlined_call_operand.vmem [shape: f32[32,128], index: 3, kind: input, shape index: {}]
  %s4 = inlined_call_operand.vmem [shape: f32[32,128], index: 4, kind: input, shape index: {}]
  %s5 = inlined_call_operand.hbm [shape: f32[8,32,128], index: 5, kind: output, shape index: {0}]
  %s6 = inlined_call_operand.hbm [shape: f32[8,32,128], index: 6, kind: output, shape index: {1}]
  %s7 = inlined_call_operand.hbm [shape: f32[32,128], index: 7, kind: output, shape index: {2}]
  %s8 = inlined_call_operand.hbm [shape: f32[32,128], index: 8, kind: output, shape index: {3}]
  %9 = xla_tuple %s5, %s6, %s7, %s8
  %s10 = sld [smem:[#allocation0]]
  $region122: #{_lambda_.1} parent=0
    _
  %s12 = ssub.s32 1, %s10
  %s13 = scalar_select 0, %s12, %s10
  $region1: #{_lambda_.1} parent=0
    #allocation4 [shape = 'u8[65536]{0}', space=vmem, size = 0x10000, scoped, tag = 'input window, operand 0']
    #allocation5 [shape = 'u8[131072]{0}', space=vmem, size = 0x20000, scoped, tag = 'output window, operand 0']
    #allocation6 [shape = 's32[2]{0}', space=sflag, size = 0x8, scoped, tag = 'scoped memory for _lambda_.1']
    #allocation7 [shape = 'u8[131072]{0}', space=vmem, size = 0x20000, scoped, tag = 'output window, operand 1']
    #allocation8 [shape = 's32[2]{0}', space=sflag, size = 0x8, scoped, tag = 'scoped memory for _lambda_.1']
    #allocation9 [shape = 'u8[16384]{0}', space=vmem, size = 0x4000, scoped, tag = 'output window, operand 2']
    #allocation10 [shape = 'u8[16384]{0}', space=vmem, size = 0x4000, scoped, tag = 'output window, operand 3']
    #allocation11 [shape = 's32[2]{0}', space=sflag, size = 0x8, scoped, tag = 'scoped memory for _lambda_.1']
    %14 = vsyncpa [#allocation6], 0
    %s15 = scalar_lea.sflag [#allocation6], 1
    %16 = vsyncpa %s15, 0
    %17 = vsyncpa [#allocation8], 0
    %s18 = scalar_lea.sflag [#allocation8], 1
    %19 = vsyncpa %s18, 0
    %20 = vsyncpa [#allocation11], 0
    %s21 = scalar_lea.sflag [#allocation11], 1
    %22 = vsyncpa %s21, 0
    loop: start=0, step=1, limit=4
    $region2: #{_lambda_.1} parent=1 // loop_pre_header
      _
    $region3: #{_lambda_.1} parent=1 // loop_header
      %s24 = sphi 0, %s28
      %p25 = scmp.ge.s32.totalorder %s24, 4
      %s31 = sphi 0, %s43
      %s32 = sphi 0, %s39
      %s33 = sphi 0, %s31
      %s34 = sphi 0, %s32
      %s35 = sphi 0, %s33
      %s36 = sphi 0, %s34
      %s48 = sphi 0, %s50
      %s51 = sphi 0, %s48
      %s52 = sphi 0, %s51
      %s68 = sphi 0, %s52
      %s72 = sphi 0, %s72
      %s74 = sphi 0, %s72
      %s75 = sphi 0, %s74
      %s89 = sphi 0, %s75
      %s93 = sphi 0, %s93
      %s95 = sphi 0, %s93
      %s96 = sphi 0, %s95
      %s110 = sphi 0, %s96
      %s116 = sphi 0, %s118
      %s119 = sphi 0, %s116
      %s120 = sphi 0, %s119
      %s136 = sphi 0, %s120
      %s142 = sphi 0, %s144
      %s145 = sphi 0, %s142
      %s146 = sphi 0, %s145
      %s162 = sphi 0, %s146
      %s170 = sphi 0, %s172
      %s173 = sphi 0, %s170
      %s174 = sphi 0, %s173
      %s190 = sphi 0, %s174
      %s198 = sphi 0, %s200
      %s201 = sphi 0, %s198
      %s202 = sphi 0, %s201
      %s218 = sphi 0, %s202
      %s224 = sphi 0, %s226
      %s227 = sphi 0, %s224
      %s228 = sphi 0, %s227
      %s244 = sphi 0, %s228
      %s250 = sphi 0, %s252
      %s253 = sphi 0, %s250
      %s254 = sphi 0, %s253
      %s270 = sphi 0, %s254
    $region4: #{_lambda_.1} parent=1 // loop_header_branch
      %27 = sbr.rel (%p25) target = $region8
    $region5: #{_lambda_.1} parent=1 // loop_body
      %s29 = ssub.s32 %s24, 1
      %s30 = ssub.s32 %s24, 2
      %s37 = sadd.s32 1, %s32
      %p38 = scmp.ge.s32.totalorder %s37, 1
      %s39 = scalar_select %p38, 0, %s37
      %s40 = sadd.s32 1, %s31
      %s41 = scalar_select %p38, %s40, %s31
      %p42 = scmp.ge.s32.totalorder %s41, 2
      %s43 = scalar_select %p42, 0, %s41
      %s44 = ssub.s32 %s32, %s39
      %s45 = ssub.s32 %s31, %s43
      %s46 = sor.u32 %s44, %s45
      %p47 = scmp.eq.s32.totalorder %s46, 0
      %s49 = sadd.s32 %s48, 1
      %s50 = scalar_select %p47, %s48, %s49
      %p53 = pneg %p47
      %p54 = scmp.eq.s32.totalorder %s24, 1
      %p55 = por %p53, %p54
      %p56 = scmp.ne.s32.totalorder %s48, %s51
      %p57 = scmp.eq.s32.totalorder %s24, 0
      %p58 = por %p56, %p57
      %p59 = scmp.ne.s32.totalorder %s48, %s51
      %p60 = scmp.eq.s32.totalorder %s29, 1
      %p61 = por %p59, %p60
      %p62 = scmp.ne.s32.totalorder %s51, %s52
      %p63 = scmp.eq.s32.totalorder %s29, 0
      %p64 = por %p62, %p63
      %p65 = scmp.ne.s32.totalorder %s51, %s52
      %p66 = scmp.eq.s32.totalorder %s30, 1
      %p67 = por %p65, %p66
      %p69 = scmp.ne.s32.totalorder %s52, %s68
      %p70 = scmp.eq.s32.totalorder %s30, 0
      %p71 = por %p69, %p70
      %s73 = sadd.s32 %s72, 1
      %p76 = scmp.eq.s32.totalorder %s24, 1
      %p77 = scmp.ne.s32.totalorder %s72, %s74
      %p78 = scmp.eq.s32.totalorder %s24, 0
      %p79 = por %p77, %p78
      %p80 = scmp.ne.s32.totalorder %s72, %s74
      %p81 = scmp.eq.s32.totalorder %s29, 1
      %p82 = por %p80, %p81
      %p83 = scmp.ne.s32.totalorder %s74, %s75
      %p84 = scmp.eq.s32.totalorder %s29, 0
      %p85 = por %p83, %p84
      %p86 = scmp.ne.s32.totalorder %s74, %s75
      %p87 = scmp.eq.s32.totalorder %s30, 1
      %p88 = por %p86, %p87
      %p90 = scmp.ne.s32.totalorder %s75, %s89
      %p91 = scmp.eq.s32.totalorder %s30, 0
      %p92 = por %p90, %p91
      %s94 = sadd.s32 %s93, 1
      %p97 = scmp.eq.s32.totalorder %s24, 1
      %p98 = scmp.ne.s32.totalorder %s93, %s95
      %p99 = scmp.eq.s32.totalorder %s24, 0
      %p100 = por %p98, %p99
      %p101 = scmp.ne.s32.totalorder %s93, %s95
      %p102 = scmp.eq.s32.totalorder %s29, 1
      %p103 = por %p101, %p102
      %p104 = scmp.ne.s32.totalorder %s95, %s96
      %p105 = scmp.eq.s32.totalorder %s29, 0
      %p106 = por %p104, %p105
      %p107 = scmp.ne.s32.totalorder %s95, %s96
      %p108 = scmp.eq.s32.totalorder %s30, 1
      %p109 = por %p107, %p108
      %p111 = scmp.ne.s32.totalorder %s96, %s110
      %p112 = scmp.eq.s32.totalorder %s30, 0
      %p113 = por %p111, %p112
      %s114 = ssub.s32 %s31, %s43
      %p115 = scmp.eq.s32.totalorder %s114, 0
      %s117 = sadd.s32 %s116, 1
      %s118 = scalar_select %p115, %s116, %s117
      %p121 = pneg %p115
      %p122 = scmp.eq.s32.totalorder %s24, 1
      %p123 = por %p121, %p122
      %p124 = scmp.ne.s32.totalorder %s116, %s119
      %p125 = scmp.eq.s32.totalorder %s24, 0
      %p126 = por %p124, %p125
      %p127 = scmp.ne.s32.totalorder %s116, %s119
      %p128 = scmp.eq.s32.totalorder %s29, 1
      %p129 = por %p127, %p128
      %p130 = scmp.ne.s32.totalorder %s119, %s120
      %p131 = scmp.eq.s32.totalorder %s29, 0
      %p132 = por %p130, %p131
      %p133 = scmp.ne.s32.totalorder %s119, %s120
      %p134 = scmp.eq.s32.totalorder %s30, 1
      %p135 = por %p133, %p134
      %p137 = scmp.ne.s32.totalorder %s120, %s136
      %p138 = scmp.eq.s32.totalorder %s30, 0
      %p139 = por %p137, %p138
      %s140 = ssub.s32 %s31, %s43
      %p141 = scmp.eq.s32.totalorder %s140, 0
      %s143 = sadd.s32 %s142, 1
      %s144 = scalar_select %p141, %s142, %s143
      %p147 = pneg %p141
      %p148 = scmp.eq.s32.totalorder %s24, 1
      %p149 = por %p147, %p148
      %p150 = scmp.ne.s32.totalorder %s142, %s145
      %p151 = scmp.eq.s32.totalorder %s24, 0
      %p152 = por %p150, %p151
      %p153 = scmp.ne.s32.totalorder %s142, %s145
      %p154 = scmp.eq.s32.totalorder %s29, 1
      %p155 = por %p153, %p154
      %p156 = scmp.ne.s32.totalorder %s145, %s146
      %p157 = scmp.eq.s32.totalorder %s29, 0
      %p158 = por %p156, %p157
      %p159 = scmp.ne.s32.totalorder %s145, %s146
      %p160 = scmp.eq.s32.totalorder %s30, 1
      %p161 = por %p159, %p160
      %p163 = scmp.ne.s32.totalorder %s146, %s162
      %p164 = scmp.eq.s32.totalorder %s30, 0
      %p165 = por %p163, %p164
      %s166 = ssub.s32 %s32, %s39
      %s167 = ssub.s32 %s31, %s43
      %s168 = sor.u32 %s166, %s167
      %p169 = scmp.eq.s32.totalorder %s168, 0
      %s171 = sadd.s32 %s170, 1
      %s172 = scalar_select %p169, %s170, %s171
      %p175 = pneg %p169
      %p176 = scmp.eq.s32.totalorder %s24, 1
      %p177 = por %p175, %p176
      %p178 = scmp.ne.s32.totalorder %s170, %s173
      %p179 = scmp.eq.s32.totalorder %s24, 0
      %p180 = por %p178, %p179
      %p181 = scmp.ne.s32.totalorder %s170, %s173
      %p182 = scmp.eq.s32.totalorder %s29, 1
      %p183 = por %p181, %p182
      %p184 = scmp.ne.s32.totalorder %s173, %s174
      %p185 = scmp.eq.s32.totalorder %s29, 0
      %p186 = por %p184, %p185
      %p187 = scmp.ne.s32.totalorder %s173, %s174
      %p188 = scmp.eq.s32.totalorder %s30, 1
      %p189 = por %p187, %p188
      %p191 = scmp.ne.s32.totalorder %s174, %s190
      %p192 = scmp.eq.s32.totalorder %s30, 0
      %p193 = por %p191, %p192
      %s194 = ssub.s32 %s32, %s39
      %s195 = ssub.s32 %s31, %s43
      %s196 = sor.u32 %s194, %s195
      %p197 = scmp.eq.s32.totalorder %s196, 0
      %s199 = sadd.s32 %s198, 1
      %s200 = scalar_select %p197, %s198, %s199
      %p203 = pneg %p197
      %p204 = scmp.eq.s32.totalorder %s24, 1
      %p205 = por %p203, %p204
      %p206 = scmp.ne.s32.totalorder %s198, %s201
      %p207 = scmp.eq.s32.totalorder %s24, 0
      %p208 = por %p206, %p207
      %p209 = scmp.ne.s32.totalorder %s198, %s201
      %p210 = scmp.eq.s32.totalorder %s29, 1
      %p211 = por %p209, %p210
      %p212 = scmp.ne.s32.totalorder %s201, %s202
      %p213 = scmp.eq.s32.totalorder %s29, 0
      %p214 = por %p212, %p213
      %p215 = scmp.ne.s32.totalorder %s201, %s202
      %p216 = scmp.eq.s32.totalorder %s30, 1
      %p217 = por %p215, %p216
      %p219 = scmp.ne.s32.totalorder %s202, %s218
      %p220 = scmp.eq.s32.totalorder %s30, 0
      %p221 = por %p219, %p220
      %s222 = ssub.s32 %s31, %s43
      %p223 = scmp.eq.s32.totalorder %s222, 0
      %s225 = sadd.s32 %s224, 1
      %s226 = scalar_select %p223, %s224, %s225
      %p229 = pneg %p223
      %p230 = scmp.eq.s32.totalorder %s24, 1
      %p231 = por %p229, %p230
      %p232 = scmp.ne.s32.totalorder %s224, %s227
      %p233 = scmp.eq.s32.totalorder %s24, 0
      %p234 = por %p232, %p233
      %p235 = scmp.ne.s32.totalorder %s224, %s227
      %p236 = scmp.eq.s32.totalorder %s29, 1
      %p237 = por %p235, %p236
      %p238 = scmp.ne.s32.totalorder %s227, %s228
      %p239 = scmp.eq.s32.totalorder %s29, 0
      %p240 = por %p238, %p239
      %p241 = scmp.ne.s32.totalorder %s227, %s228
      %p242 = scmp.eq.s32.totalorder %s30, 1
      %p243 = por %p241, %p242
      %p245 = scmp.ne.s32.totalorder %s228, %s244
      %p246 = scmp.eq.s32.totalorder %s30, 0
      %p247 = por %p245, %p246
      %s248 = ssub.s32 %s31, %s43
      %p249 = scmp.eq.s32.totalorder %s248, 0
      %s251 = sadd.s32 %s250, 1
      %s252 = scalar_select %p249, %s250, %s251
      %p255 = pneg %p249
      %p256 = scmp.eq.s32.totalorder %s24, 1
      %p257 = por %p255, %p256
      %p258 = scmp.ne.s32.totalorder %s250, %s253
      %p259 = scmp.eq.s32.totalorder %s24, 0
      %p260 = por %p258, %p259
      %p261 = scmp.ne.s32.totalorder %s250, %s253
      %p262 = scmp.eq.s32.totalorder %s29, 1
      %p263 = por %p261, %p262
      %p264 = scmp.ne.s32.totalorder %s253, %s254
      %p265 = scmp.eq.s32.totalorder %s29, 0
      %p266 = por %p264, %p265
      %p267 = scmp.ne.s32.totalorder %s253, %s254
      %p268 = scmp.eq.s32.totalorder %s30, 1
      %p269 = por %p267, %p268
      %p271 = scmp.ne.s32.totalorder %s254, %s270
      %p272 = scmp.eq.s32.totalorder %s30, 0
      %p273 = por %p271, %p272
      %p274 = scmp.le.s32.totalorder 1, %s24
      %p275 = scmp.lt.s32.totalorder %s24, 3
      %p276 = pnand %p274, %p275
      %p277 = pneg %p276
      // Predicated region
      $region9: #{_lambda_.1} parent=5 // pred_check
        _
      $region10: #{_lambda_.1} parent=5 // pred_check_branch
        %279 = sbr.rel (%p276) target = $region12
      $region11: #{_lambda_.1} parent=5 // pred_region
        %s280 = ssub.s32 %s24, 1
        // Predicated region
        $region13: #{_lambda_.1} parent=11 // pred_check
          %p281 = pneg %p85
        $region14: #{_lambda_.1} parent=11 // pred_check_branch
          %283 = sbr.rel (%p281) target = $region16
        $region15: #{_lambda_.1} parent=11 // pred_region
          _
        $region16: #{_lambda_.1} parent=11 // pred_fallthru
          _
        // Predicated region
        $region17: #{_lambda_.1} parent=11 // pred_check
          %p284 = pneg %p106
        $region18: #{_lambda_.1} parent=11 // pred_check_branch
          %286 = sbr.rel (%p284) target = $region20
        $region19: #{_lambda_.1} parent=11 // pred_region
          _
        $region20: #{_lambda_.1} parent=11 // pred_fallthru
          _
      $region12: #{_lambda_.1} parent=5 // pred_fallthru
        _
      %p287 = scmp.lt.s32.totalorder %s24, 2
      // Predicated region
      $region21: #{_lambda_.1} parent=5 // pred_check
        %p288 = pneg %p287
      $region22: #{_lambda_.1} parent=5 // pred_check_branch
        %290 = sbr.rel (%p288) target = $region24
      $region23: #{_lambda_.1} parent=5 // pred_region
        // Predicated region
        $region25: #{_lambda_.1} parent=23 // pred_check
          %p291 = pneg %p58
        $region26: #{_lambda_.1} parent=23 // pred_check_branch
          %293 = sbr.rel (%p291) target = $region28
        $region27: #{_lambda_.1} parent=23 // pred_region
          %s294 = sand.u32 %s48, 1
          %s295 = sand.u32 %s48, 1
          %s296 = smul.addr %s295, 64
          %s297 = scalar_lea.vmem [#allocation4], %s296
          %s298 = smul.u32 8, %s32
          %s299 = smul.u32 2, %s31
          %s300 = smul.addr %s298, 4
          %s301 = sadd.s32 %s299, %s300
          %s302 = smul.addr %s301, 4
          %s303 = scalar_lea.vmem %s0, %s302
          // Predicated region
          $region29: #{_lambda_.1} parent=27 // pred_check
            _
          $region30: #{_lambda_.1} parent=27 // pred_check_branch
            %305 = sbr.rel (0) target = $region32
          $region31: #{_lambda_.1} parent=27 // pred_region
            // Predicated region
            $region33: #{_lambda_.1} parent=31 // pred_check
              _
            $region34: #{_lambda_.1} parent=31 // pred_check_branch
              %307 = sbr.rel target = $region36
            $region35: #{_lambda_.1} parent=31 // pred_region
              // Predicated region
              $region48: #{_lambda_.1} parent=35 // pred_check
                _
              $region49: #{_lambda_.1} parent=35 // pred_check_branch
                %352 = sbr.rel (0) target = $region51
              $region50: #{_lambda_.1} parent=35 // pred_region
                loop: start=0, step=1, limit=1
                $region52: #{_lambda_.1} parent=50 // loop_pre_header
                  _
                $region53: #{_lambda_.1} parent=50 // loop_header
                  %s354 = sphi 0, %s358
                  %p355 = scmp.ge.s32.totalorder %s354, 1
                  %s359 = sphi %s303, %s303
                  %s360 = sphi %s297, %s297
                $region54: #{_lambda_.1} parent=50 // loop_header_branch
                  %357 = sbr.rel (%p355) target = $region58
                $region55: #{_lambda_.1} parent=50 // loop_body
                  _
                $region56: #{_lambda_.1} parent=50 // loop_footer
                  %s358 = sadd.s32 1, %s354
                $region57: #{_lambda_.1} parent=50 // loop_footer_branch
                  %353 = sbr.rel target = $region53
                $region58: #{_lambda_.1} parent=50 // loop_exit
                  _
                loop: start=0, step=1, limit=1
                $region59: #{_lambda_.1} parent=50 // loop_pre_header
                  _
                $region60: #{_lambda_.1} parent=50 // loop_header
                  %s363 = sphi 0, %s367
                  %p364 = scmp.ge.s32.totalorder %s363, 1
                  %s368 = sphi %s303, %s303
                  %s369 = sphi %s297, %s297
                $region61: #{_lambda_.1} parent=50 // loop_header_branch
                  %366 = sbr.rel (%p364) target = $region65
                $region62: #{_lambda_.1} parent=50 // loop_body
                  %v370 = vld [vmem:[%s368] sm:$0xf]
                  %371 = vst [vmem:[%s369] sm:$0xf] %v370
                  %v372 = vld [vmem:[%s368 + $0x4] sm:$0xf]
                  %373 = vst [vmem:[%s369 + $0x4] sm:$0xf] %v372
                  %v374 = vld [vmem:[%s368 + $0x10] sm:$0xf]
                  %375 = vst [vmem:[%s369 + $0x8] sm:$0xf] %v374
                  %v376 = vld [vmem:[%s368 + $0x14] sm:$0xf]
                  %377 = vst [vmem:[%s369 + $0xc] sm:$0xf] %v376
                  %v378 = vld [vmem:[%s368 + $0x20] sm:$0xf]
                  %379 = vst [vmem:[%s369 + $0x10] sm:$0xf] %v378
                  %v380 = vld [vmem:[%s368 + $0x24] sm:$0xf]
                  %381 = vst [vmem:[%s369 + $0x14] sm:$0xf] %v380
                  %v382 = vld [vmem:[%s368 + $0x30] sm:$0xf]
                  %383 = vst [vmem:[%s369 + $0x18] sm:$0xf] %v382
                  %v384 = vld [vmem:[%s368 + $0x34] sm:$0xf]
                  %385 = vst [vmem:[%s369 + $0x1c] sm:$0xf] %v384
                  %v386 = vld [vmem:[%s368 + $0x40] sm:$0xf]
                  %387 = vst [vmem:[%s369 + $0x20] sm:$0xf] %v386
                  %v388 = vld [vmem:[%s368 + $0x44] sm:$0xf]
                  %389 = vst [vmem:[%s369 + $0x24] sm:$0xf] %v388
                  %v390 = vld [vmem:[%s368 + $0x50] sm:$0xf]
                  %391 = vst [vmem:[%s369 + $0x28] sm:$0xf] %v390
                  %v392 = vld [vmem:[%s368 + $0x54] sm:$0xf]
                  %393 = vst [vmem:[%s369 + $0x2c] sm:$0xf] %v392
                  %v394 = vld [vmem:[%s368 + $0x60] sm:$0xf]
                  %395 = vst [vmem:[%s369 + $0x30] sm:$0xf] %v394
                  %v396 = vld [vmem:[%s368 + $0x64] sm:$0xf]
                  %397 = vst [vmem:[%s369 + $0x34] sm:$0xf] %v396
                  %v398 = vld [vmem:[%s368 + $0x70] sm:$0xf]
                  %399 = vst [vmem:[%s369 + $0x38] sm:$0xf] %v398
                  %v400 = vld [vmem:[%s368 + $0x74] sm:$0xf]
                  %401 = vst [vmem:[%s369 + $0x3c] sm:$0xf] %v400
                $region63: #{_lambda_.1} parent=50 // loop_footer
                  %s367 = sadd.s32 1, %s363
                $region64: #{_lambda_.1} parent=50 // loop_footer_branch
                  %362 = sbr.rel target = $region60
                $region65: #{_lambda_.1} parent=50 // loop_exit
                  _
              $region51: #{_lambda_.1} parent=35 // pred_fallthru
                _
            $region36: #{_lambda_.1} parent=31 // pred_fallthru
              _
            // Predicated region
            $region37: #{_lambda_.1} parent=31 // pred_check
              _
            $region38: #{_lambda_.1} parent=31 // pred_check_branch
              %309 = sbr.rel (0) target = $region40
            $region39: #{_lambda_.1} parent=31 // pred_region
              loop: start=0, step=1, limit=1
              $region41: #{_lambda_.1} parent=39 // loop_pre_header
                _
              $region42: #{_lambda_.1} parent=39 // loop_header
                %s312 = sphi 0, %s316
                %p313 = scmp.ge.s32.totalorder %s312, 1
                %s317 = sphi %s303, %s303
                %s318 = sphi %s297, %s297
              $region43: #{_lambda_.1} parent=39 // loop_header_branch
                %315 = sbr.rel (%p313) target = $region47
              $region44: #{_lambda_.1} parent=39 // loop_body
                %v319 = vld [vmem:[%s317] sm:$0xf]
                %320 = vst [vmem:[%s318] sm:$0xf] %v319
                %v321 = vld [vmem:[%s317 + $0x4] sm:$0xf]
                %322 = vst [vmem:[%s318 + $0x4] sm:$0xf] %v321
                %v323 = vld [vmem:[%s317 + $0x10] sm:$0xf]
                %324 = vst [vmem:[%s318 + $0x8] sm:$0xf] %v323
                %v325 = vld [vmem:[%s317 + $0x14] sm:$0xf]
                %326 = vst [vmem:[%s318 + $0xc] sm:$0xf] %v325
                %v327 = vld [vmem:[%s317 + $0x20] sm:$0xf]
                %328 = vst [vmem:[%s318 + $0x10] sm:$0xf] %v327
                %v329 = vld [vmem:[%s317 + $0x24] sm:$0xf]
                %330 = vst [vmem:[%s318 + $0x14] sm:$0xf] %v329
                %v331 = vld [vmem:[%s317 + $0x30] sm:$0xf]
                %332 = vst [vmem:[%s318 + $0x18] sm:$0xf] %v331
                %v333 = vld [vmem:[%s317 + $0x34] sm:$0xf]
                %334 = vst [vmem:[%s318 + $0x1c] sm:$0xf] %v333
                %v335 = vld [vmem:[%s317 + $0x40] sm:$0xf]
                %336 = vst [vmem:[%s318 + $0x20] sm:$0xf] %v335
                %v337 = vld [vmem:[%s317 + $0x44] sm:$0xf]
                %338 = vst [vmem:[%s318 + $0x24] sm:$0xf] %v337
                %v339 = vld [vmem:[%s317 + $0x50] sm:$0xf]
                %340 = vst [vmem:[%s318 + $0x28] sm:$0xf] %v339
                %v341 = vld [vmem:[%s317 + $0x54] sm:$0xf]
                %342 = vst [vmem:[%s318 + $0x2c] sm:$0xf] %v341
                %v343 = vld [vmem:[%s317 + $0x60] sm:$0xf]
                %344 = vst [vmem:[%s318 + $0x30] sm:$0xf] %v343
                %v345 = vld [vmem:[%s317 + $0x64] sm:$0xf]
                %346 = vst [vmem:[%s318 + $0x34] sm:$0xf] %v345
                %v347 = vld [vmem:[%s317 + $0x70] sm:$0xf]
                %348 = vst [vmem:[%s318 + $0x38] sm:$0xf] %v347
                %v349 = vld [vmem:[%s317 + $0x74] sm:$0xf]
                %350 = vst [vmem:[%s318 + $0x3c] sm:$0xf] %v349
              $region45: #{_lambda_.1} parent=39 // loop_footer
                %s316 = sadd.s32 1, %s312
              $region46: #{_lambda_.1} parent=39 // loop_footer_branch
                %311 = sbr.rel target = $region42
              $region47: #{_lambda_.1} parent=39 // loop_exit
                _
            $region40: #{_lambda_.1} parent=31 // pred_fallthru
              _
          $region32: #{_lambda_.1} parent=27 // pred_fallthru
            _
          %402 = vnop
        $region28: #{_lambda_.1} parent=23 // pred_fallthru
          _
        // Predicated region
        $region66: #{_lambda_.1} parent=23 // pred_check
          %p403 = pneg %p126
        $region67: #{_lambda_.1} parent=23 // pred_check_branch
          %405 = sbr.rel (%p403) target = $region69
        $region68: #{_lambda_.1} parent=23 // pred_region
          %s406 = smul.u32 2, %s31
          %p407 = scmp.lt.s32.totalorder %s406, 3
          %s408 = scalar_select %p407, %s406, 3
          %s409 = smul.addr %s408, 8
          %s410 = scalar_lea.vmem %s3, %s409
          %s411 = smul.u32 2, %s31
        $region69: #{_lambda_.1} parent=23 // pred_fallthru
          _
        // Predicated region
        $region70: #{_lambda_.1} parent=23 // pred_check
          %p412 = pneg %p152
        $region71: #{_lambda_.1} parent=23 // pred_check_branch
          %414 = sbr.rel (%p412) target = $region73
        $region72: #{_lambda_.1} parent=23 // pred_region
          %s415 = smul.u32 2, %s31
          %p416 = scmp.lt.s32.totalorder %s415, 3
          %s417 = scalar_select %p416, %s415, 3
          %s418 = smul.addr %s417, 8
          %s419 = scalar_lea.vmem %s4, %s418
          %s420 = smul.u32 2, %s31
        $region73: #{_lambda_.1} parent=23 // pred_fallthru
          _
      $region24: #{_lambda_.1} parent=5 // pred_fallthru
        _
      %p421 = scmp.le.s32.totalorder 1, %s24
      %p422 = scmp.lt.s32.totalorder %s24, 3
      %p423 = pnand %p421, %p422
      %p424 = pneg %p423
      // Predicated region
      $region74: #{_lambda_.1} parent=5 // pred_check
        _
      $region75: #{_lambda_.1} parent=5 // pred_check_branch
        %426 = sbr.rel (%p423) target = $region77
      $region76: #{_lambda_.1} parent=5 // pred_region
        %s427 = ssub.s32 %s24, 1
        %s428 = sand.u32 %s51, 1
        %s429 = sand.u32 %s51, 1
        %s430 = smul.addr %s429, 64
        %s431 = scalar_lea.vmem [#allocation4], %s430
        // Predicated region
        $region78: #{_lambda_.1} parent=76 // pred_check
          %p432 = pneg %p64
        $region79: #{_lambda_.1} parent=76 // pred_check_branch
          %434 = sbr.rel (%p432) target = $region81
        $region80: #{_lambda_.1} parent=76 // pred_region
          _
        $region81: #{_lambda_.1} parent=76 // pred_fallthru
          _
        %s435 = sand.u32 %s51, 1
        %s436 = sand.u32 %s51, 1
        %s437 = smul.addr %s436, 64
        %s438 = scalar_lea.vmem [#allocation4], %s437
        %p439 = pneg %p64
        %p440 = pneg %p61
        %p441 = pneg %p85
        %p442 = pneg %p82
        %p443 = pneg %p106
        %p444 = pneg %p103
        %s445 = smul.u32 2, %s33
        %p446 = scmp.lt.s32.totalorder %s445, 3
        %s447 = scalar_select %p446, %s445, 3
        %s448 = smul.addr %s447, 8
        %s449 = scalar_lea.vmem %s3, %s448
        %p450 = pneg %p132
        %p451 = pneg %p129
        %s452 = smul.u32 2, %s33
        %p453 = scmp.lt.s32.totalorder %s452, 3
        %s454 = scalar_select %p453, %s452, 3
        %s455 = smul.addr %s454, 8
        %s456 = scalar_lea.vmem %s4, %s455
        %p457 = pneg %p158
        %p458 = pneg %p155
        %p459 = pneg %p186
        %p460 = pneg %p183
        %s461 = sand.u32 %s173, 1
        %s462 = scalar_lea.sflag [#allocation6], %s461
        %s463 = sand.u32 %s173, 1
        %s464 = smul.addr %s463, 128
        %s465 = scalar_lea.vmem [#allocation5], %s464
        %p466 = pneg %p214
        %p467 = pneg %p211
        %s468 = sand.u32 %s29, 1
        %s469 = scalar_lea.sflag [#allocation8], %s468
        %s470 = sand.u32 %s201, 1
        %s471 = smul.addr %s470, 128
        %s472 = scalar_lea.vmem [#allocation7], %s471
        %p473 = pneg %p240
        %p474 = pneg %p237
        %s475 = sand.u32 %s29, 1
        %s476 = scalar_lea.sflag [#allocation8], %s475
        %s477 = sand.u32 %s227, 1
        %s478 = smul.addr %s477, 16
        %s479 = scalar_lea.vmem [#allocation9], %s478
        %p480 = pneg %p266
        %p481 = pneg %p263
        %s482 = sand.u32 %s253, 1
        %s483 = scalar_lea.sflag [#allocation11], %s482
        %s484 = sand.u32 %s253, 1
        %s485 = smul.addr %s484, 16
        %s486 = scalar_lea.vmem [#allocation10], %s485
        %s487 = smul.u32 8, %s34
        %s488 = smul.u32 2, %s33
        %s489 = smul.u32 2, %s33
        %p490 = scmp.lt.s32.totalorder %s489, 3
        %s491 = scalar_select %p490, %s489, 3
        %s492 = smul.addr %s491, 8
        %s493 = scalar_lea.vmem %s3, %s492
        %s494 = smul.u32 2, %s33
        %s495 = smul.u32 2, %s33
        %p496 = scmp.lt.s32.totalorder %s495, 3
        %s497 = scalar_select %p496, %s495, 3
        %s498 = smul.addr %s497, 8
        %s499 = scalar_lea.vmem %s4, %s498
        %s500 = smul.u32 2, %s33
        %s501 = smul.u32 8, %s34
        %s502 = smul.u32 2, %s33
        %s503 = smul.u32 8, %s34
        %s504 = smul.u32 2, %s33
        %s505 = smul.u32 2, %s33
        %s506 = smul.u32 2, %s33
        %p508 = scmp.eq.s32.totalorder %s34, 0
        // Predicated region
        $region82: #{_lambda_.1} parent=76 // pred_check
          %p509 = pneg %p508
        $region83: #{_lambda_.1} parent=76 // pred_check_branch
          %511 = sbr.rel (%p509) target = $region85
        $region84: #{_lambda_.1} parent=76 // pred_region
          %v512 = vld [vmem:[%s493] sm:$0xff]
          %v513 = vld [vmem:[%s493 + $0x8] sm:$0xff]
          %514 = vst [vmem:[#allocation2] sm:$0xff] %v512
          %515 = vst [vmem:[#allocation2 + $0x8] sm:$0xff] %v513
          %v516 = vld [vmem:[%s499] sm:$0xff]
          %v517 = vld [vmem:[%s499 + $0x8] sm:$0xff]
          %518 = vst [vmem:[#allocation3] sm:$0xff] %v516
          %519 = vst [vmem:[#allocation3 + $0x8] sm:$0xff] %v517
        $region85: #{_lambda_.1} parent=76 // pred_fallthru
          _
        %v520 = vld [vmem:[#allocation2] sm:$0xff]
        %v521 = vld [vmem:[#allocation2 + $0x8] sm:$0xff]
        %522 = vst [vmem:[%s465] sm:$0xff] %v520
        %523 = vst [vmem:[%s465 + $0x8] sm:$0xff] %v521
        %v524 = vld [vmem:[#allocation3] sm:$0xff]
        %v525 = vld [vmem:[#allocation3 + $0x8] sm:$0xff]
        %526 = vst [vmem:[%s472] sm:$0xff] %v524
        %527 = vst [vmem:[%s472 + $0x8] sm:$0xff] %v525
        %v528 = vld [vmem:[%s431] sm:$0xf]
        %v529 = vld [vmem:[%s431 + $0x4] sm:$0xf]
        %v530 = vld [vmem:[%s1] sm:$0xf]
        %v531 = vld [vmem:[%s1 + $0x4] sm:$0xf]
        %v532 = vld [vmem:[%s2] sm:$0x1]
        %v534 = vlaneseq
        %v535 = vshrl.u32 %v534, 7
        %v536 = vsub.s32 0, %v535
        %v537 = vrot.slane %v532, %v536
        %v541 = vunpack.c.l.b16 %v528
        %v542 = vunpack.c.l.b16 %v529
        %v543 = vpack.c.b16 %v542, %v541
        %v546 = vunpack.c.l.b16 %v530
        %v547 = vunpack.c.l.b16 %v531
        %v548 = vpack.c.b16 %v547, %v546
        %vm550 = vcmask 130048
        %v552 = vsel %vm550, %v543, 0
        %554 = vmatprep.subr.bf16.mxu0 0
        %555 = vmatpush1.bf16.msra.mxu0 %v548
        %556 = vmatprep.subr.bf16.mxu0 0
        %557 = vmatpush1.bf16.msra.mxu0 0
        %558 = vmatprep.subr.bf16.mxu0 0
        %559 = vmatpush1.bf16.msra.mxu0 0
        %560 = vmatprep.subr.bf16.mxu0 0
        %561 = vmatpush1.bf16.msra.mxu0 0
        %562 = vmatprep.subr.bf16.mxu0 0
        %563 = vmatpush1.bf16.msra.mxu0 0
        %564 = vmatprep.subr.bf16.mxu0 0
        %565 = vmatpush1.bf16.msra.mxu0 0
        %566 = vmatprep.subr.bf16.mxu0 0
        %567 = vmatpush1.bf16.msra.mxu0 0
        %568 = vmatprep.subr.bf16.mxu0 0
        %569 = vmatpush1.bf16.msra.mxu0 0
        %570 = vmatprep.subr.bf16.mxu0 0
        %571 = vmatpush1.bf16.msra.mxu0 0
        %572 = vmatprep.subr.bf16.mxu0 0
        %573 = vmatpush1.bf16.msra.mxu0 0
        %574 = vmatprep.subr.bf16.mxu0 0
        %575 = vmatpush1.bf16.msra.mxu0 0
        %576 = vmatprep.subr.bf16.mxu0 0
        %577 = vmatpush1.bf16.msra.mxu0 0
        %578 = vmatprep.subr.bf16.mxu0 0
        %579 = vmatpush1.bf16.msra.mxu0 0
        %580 = vmatprep.subr.bf16.mxu0 0
        %581 = vmatpush1.bf16.msra.mxu0 0
        %582 = vmatprep.subr.bf16.mxu0 0
        %583 = vmatpush1.bf16.msra.mxu0 0
        %584 = vmatprep.subr.bf16.mxu0 0
        %585 = vmatpush1.bf16.msra.mxu0 0
        %586 = vmatprep.mubr.bf16.mxu0 0
        %587 = vmatmul.mubr.bf16.gmra.mrb[0].mxu0 %v552
        %v588 = vpop.f32.mrb[0].mxu0
        %v589 = vadd.f32 %v537, %v588
        %v590 = vpop.f32.mrb[0].mxu0
        %v591 = vpop.f32.mrb[0].mxu0
        %v592 = vadd.f32 %v537, %v591
        %v593 = vpop.f32.mrb[0].mxu0
        %594 = vdwg.mxu0
        %v595 = vld [vmem:[#allocation2] sm:$0xff]
        %v596 = vld [vmem:[#allocation2 + $0x8] sm:$0xff]
        %v597 = vmul.f32 %v595, 0.9
        %v598 = vmul.f32 %v596, 0.9
        %v599 = vadd.f32 %v589, %v597
        %v600 = vadd.f32 %v592, %v598
        %v601 = vsub.f32 %v599, 2.0
        %v602 = vsub.f32 %v600, 2.0
        %v603 = vmax.f32 %v601, 0.0
        %v604 = vmax.f32 %v602, 0.0
        %vm605 = vcmp.gt.f32.partialorder %v603, 0.0
        %vm606 = vcmp.gt.f32.partialorder %v604, 0.0
        %v607 = vmul.f32 %v599, -0.25
        %v608 = vmul.f32 %v600, -0.25
        %v609 = vsel %vm605, %v607, %v599
        %v610 = vsel %vm606, %v608, %v600
        %611 = vst [vmem:[#allocation2] sm:$0xff] %v609
        %612 = vst [vmem:[#allocation2 + $0x8] sm:$0xff] %v610
        %613 = vst [vmem:[#allocation3] sm:$0xff] %v603
        %614 = vst [vmem:[#allocation3 + $0x8] sm:$0xff] %v604
        %v615 = vld [vmem:[#allocation2] sm:$0xff]
        %v616 = vld [vmem:[#allocation2 + $0x8] sm:$0xff]
        %s617 = scalar_lea.vmem %s465, 16 [#allocation5]
        %618 = vst [vmem:[%s617] sm:$0xff] %v615
        %619 = vst [vmem:[%s617 + $0x8] sm:$0xff] %v616
        %v620 = vld [vmem:[#allocation3] sm:$0xff]
        %v621 = vld [vmem:[#allocation3 + $0x8] sm:$0xff]
        %s622 = scalar_lea.vmem %s472, 16 [#allocation7]
        %623 = vst [vmem:[%s622] sm:$0xff] %v620
        %624 = vst [vmem:[%s622 + $0x8] sm:$0xff] %v621
        %s625 = scalar_lea.vmem %s431, 8 [#allocation4]
        %v626 = vld [vmem:[%s625] sm:$0xf]
        %v627 = vld [vmem:[%s625 + $0x4] sm:$0xf]
        %v628 = vld [vmem:[%s1] sm:$0xf]
        %v629 = vld [vmem:[%s1 + $0x4] sm:$0xf]
        %v630 = vld [vmem:[%s2] sm:$0x1]
        %v632 = vlaneseq
        %v633 = vshrl.u32 %v632, 7
        %v634 = vsub.s32 0, %v633
        %v635 = vrot.slane %v630, %v634
        %v639 = vunpack.c.l.b16 %v626
        %v640 = vunpack.c.l.b16 %v627
        %v641 = vpack.c.b16 %v640, %v639
        %v644 = vunpack.c.l.b16 %v628
        %v645 = vunpack.c.l.b16 %v629
        %v646 = vpack.c.b16 %v645, %v644
        %v649 = vsel %vm550, %v641, 0
        %651 = vmatprep.subr.bf16.mxu0 0
        %652 = vmatpush1.bf16.msra.mxu0 %v646
        %653 = vmatprep.subr.bf16.mxu0 0
        %654 = vmatpush1.bf16.msra.mxu0 0
        %655 = vmatprep.subr.bf16.mxu0 0
        %656 = vmatpush1.bf16.msra.mxu0 0
        %657 = vmatprep.subr.bf16.mxu0 0
        %658 = vmatpush1.bf16.msra.mxu0 0
        %659 = vmatprep.subr.bf16.mxu0 0
        %660 = vmatpush1.bf16.msra.mxu0 0
        %661 = vmatprep.subr.bf16.mxu0 0
        %662 = vmatpush1.bf16.msra.mxu0 0
        %663 = vmatprep.subr.bf16.mxu0 0
        %664 = vmatpush1.bf16.msra.mxu0 0
        %665 = vmatprep.subr.bf16.mxu0 0
        %666 = vmatpush1.bf16.msra.mxu0 0
        %667 = vmatprep.subr.bf16.mxu0 0
        %668 = vmatpush1.bf16.msra.mxu0 0
        %669 = vmatprep.subr.bf16.mxu0 0
        %670 = vmatpush1.bf16.msra.mxu0 0
        %671 = vmatprep.subr.bf16.mxu0 0
        %672 = vmatpush1.bf16.msra.mxu0 0
        %673 = vmatprep.subr.bf16.mxu0 0
        %674 = vmatpush1.bf16.msra.mxu0 0
        %675 = vmatprep.subr.bf16.mxu0 0
        %676 = vmatpush1.bf16.msra.mxu0 0
        %677 = vmatprep.subr.bf16.mxu0 0
        %678 = vmatpush1.bf16.msra.mxu0 0
        %679 = vmatprep.subr.bf16.mxu0 0
        %680 = vmatpush1.bf16.msra.mxu0 0
        %681 = vmatprep.subr.bf16.mxu0 0
        %682 = vmatpush1.bf16.msra.mxu0 0
        %683 = vmatprep.mubr.bf16.mxu0 0
        %684 = vmatmul.mubr.bf16.gmra.mrb[0].mxu0 %v649
        %v685 = vpop.f32.mrb[0].mxu0
        %v686 = vadd.f32 %v635, %v685
        %v687 = vpop.f32.mrb[0].mxu0
        %v688 = vpop.f32.mrb[0].mxu0
        %v689 = vadd.f32 %v635, %v688
        %v690 = vpop.f32.mrb[0].mxu0
        %691 = vdwg.mxu0
        %v692 = vld [vmem:[#allocation2] sm:$0xff]
        %v693 = vld [vmem:[#allocation2 + $0x8] sm:$0xff]
        %v694 = vmul.f32 %v692, 0.9
        %v695 = vmul.f32 %v693, 0.9
        %v696 = vadd.f32 %v686, %v694
        %v697 = vadd.f32 %v689, %v695
        %v698 = vsub.f32 %v696, 2.0
        %v699 = vsub.f32 %v697, 2.0
        %v700 = vmax.f32 %v698, 0.0
        %v701 = vmax.f32 %v699, 0.0
        %vm702 = vcmp.gt.f32.partialorder %v700, 0.0
        %vm703 = vcmp.gt.f32.partialorder %v701, 0.0
        %v704 = vmul.f32 %v696, -0.25
        %v705 = vmul.f32 %v697, -0.25
        %v706 = vsel %vm702, %v704, %v696
        %v707 = vsel %vm703, %v705, %v697
        %708 = vst [vmem:[#allocation2] sm:$0xff] %v706
        %709 = vst [vmem:[#allocation2 + $0x8] sm:$0xff] %v707
        %710 = vst [vmem:[#allocation3] sm:$0xff] %v700
        %711 = vst [vmem:[#allocation3 + $0x8] sm:$0xff] %v701
        %v712 = vld [vmem:[#allocation2] sm:$0xff]
        %v713 = vld [vmem:[#allocation2 + $0x8] sm:$0xff]
        %s714 = scalar_lea.vmem %s465, 32 [#allocation5]
        %715 = vst [vmem:[%s714] sm:$0xff] %v712
        %716 = vst [vmem:[%s714 + $0x8] sm:$0xff] %v713
        %v717 = vld [vmem:[#allocation3] sm:$0xff]
        %v718 = vld [vmem:[#allocation3 + $0x8] sm:$0xff]
        %s719 = scalar_lea.vmem %s472, 32 [#allocation7]
        %720 = vst [vmem:[%s719] sm:$0xff] %v717
        %721 = vst [vmem:[%s719 + $0x8] sm:$0xff] %v718
        %s722 = scalar_lea.vmem %s431, 16 [#allocation4]
        %v723 = vld [vmem:[%s722] sm:$0xf]
        %v724 = vld [vmem:[%s722 + $0x4] sm:$0xf]
        %v725 = vld [vmem:[%s1] sm:$0xf]
        %v726 = vld [vmem:[%s1 + $0x4] sm:$0xf]
        %v727 = vld [vmem:[%s2] sm:$0x1]
        %v729 = vlaneseq
        %v730 = vshrl.u32 %v729, 7
        %v731 = vsub.s32 0, %v730
        %v732 = vrot.slane %v727, %v731
        %v736 = vunpack.c.l.b16 %v723
        %v737 = vunpack.c.l.b16 %v724
        %v738 = vpack.c.b16 %v737, %v736
        %v741 = vunpack.c.l.b16 %v725
        %v742 = vunpack.c.l.b16 %v726
        %v743 = vpack.c.b16 %v742, %v741
        %v746 = vsel %vm550, %v738, 0
        %748 = vmatprep.subr.bf16.mxu0 0
        %749 = vmatpush1.bf16.msra.mxu0 %v743
        %750 = vmatprep.subr.bf16.mxu0 0
        %751 = vmatpush1.bf16.msra.mxu0 0
        %752 = vmatprep.subr.bf16.mxu0 0
        %753 = vmatpush1.bf16.msra.mxu0 0
        %754 = vmatprep.subr.bf16.mxu0 0
        %755 = vmatpush1.bf16.msra.mxu0 0
        %756 = vmatprep.subr.bf16.mxu0 0
        %757 = vmatpush1.bf16.msra.mxu0 0
        %758 = vmatprep.subr.bf16.mxu0 0
        %759 = vmatpush1.bf16.msra.mxu0 0
        %760 = vmatprep.subr.bf16.mxu0 0
        %761 = vmatpush1.bf16.msra.mxu0 0
        %762 = vmatprep.subr.bf16.mxu0 0
        %763 = vmatpush1.bf16.msra.mxu0 0
        %764 = vmatprep.subr.bf16.mxu0 0
        %765 = vmatpush1.bf16.msra.mxu0 0
        %766 = vmatprep.subr.bf16.mxu0 0
        %767 = vmatpush1.bf16.msra.mxu0 0
        %768 = vmatprep.subr.bf16.mxu0 0
        %769 = vmatpush1.bf16.msra.mxu0 0
        %770 = vmatprep.subr.bf16.mxu0 0
        %771 = vmatpush1.bf16.msra.mxu0 0
        %772 = vmatprep.subr.bf16.mxu0 0
        %773 = vmatpush1.bf16.msra.mxu0 0
        %774 = vmatprep.subr.bf16.mxu0 0
        %775 = vmatpush1.bf16.msra.mxu0 0
        %776 = vmatprep.subr.bf16.mxu0 0
        %777 = vmatpush1.bf16.msra.mxu0 0
        %778 = vmatprep.subr.bf16.mxu0 0
        %779 = vmatpush1.bf16.msra.mxu0 0
        %780 = vmatprep.mubr.bf16.mxu0 0
        %781 = vmatmul.mubr.bf16.gmra.mrb[0].mxu0 %v746
        %v782 = vpop.f32.mrb[0].mxu0
        %v783 = vadd.f32 %v732, %v782
        %v784 = vpop.f32.mrb[0].mxu0
        %v785 = vpop.f32.mrb[0].mxu0
        %v786 = vadd.f32 %v732, %v785
        %v787 = vpop.f32.mrb[0].mxu0
        %788 = vdwg.mxu0
        %v789 = vld [vmem:[#allocation2] sm:$0xff]
        %v790 = vld [vmem:[#allocation2 + $0x8] sm:$0xff]
        %v791 = vmul.f32 %v789, 0.9
        %v792 = vmul.f32 %v790, 0.9
        %v793 = vadd.f32 %v783, %v791
        %v794 = vadd.f32 %v786, %v792
        %v795 = vsub.f32 %v793, 2.0
        %v796 = vsub.f32 %v794, 2.0
        %v797 = vmax.f32 %v795, 0.0
        %v798 = vmax.f32 %v796, 0.0
        %vm799 = vcmp.gt.f32.partialorder %v797, 0.0
        %vm800 = vcmp.gt.f32.partialorder %v798, 0.0
        %v801 = vmul.f32 %v793, -0.25
        %v802 = vmul.f32 %v794, -0.25
        %v803 = vsel %vm799, %v801, %v793
        %v804 = vsel %vm800, %v802, %v794
        %805 = vst [vmem:[#allocation2] sm:$0xff] %v803
        %806 = vst [vmem:[#allocation2 + $0x8] sm:$0xff] %v804
        %807 = vst [vmem:[#allocation3] sm:$0xff] %v797
        %808 = vst [vmem:[#allocation3 + $0x8] sm:$0xff] %v798
        %v809 = vld [vmem:[#allocation2] sm:$0xff]
        %v810 = vld [vmem:[#allocation2 + $0x8] sm:$0xff]
        %s811 = scalar_lea.vmem %s465, 48 [#allocation5]
        %812 = vst [vmem:[%s811] sm:$0xff] %v809
        %813 = vst [vmem:[%s811 + $0x8] sm:$0xff] %v810
        %v814 = vld [vmem:[#allocation3] sm:$0xff]
        %v815 = vld [vmem:[#allocation3 + $0x8] sm:$0xff]
        %s816 = scalar_lea.vmem %s472, 48 [#allocation7]
        %817 = vst [vmem:[%s816] sm:$0xff] %v814
        %818 = vst [vmem:[%s816 + $0x8] sm:$0xff] %v815
        %s819 = scalar_lea.vmem %s431, 24 [#allocation4]
        %v820 = vld [vmem:[%s819] sm:$0xf]
        %v821 = vld [vmem:[%s819 + $0x4] sm:$0xf]
        %v822 = vld [vmem:[%s1] sm:$0xf]
        %v823 = vld [vmem:[%s1 + $0x4] sm:$0xf]
        %v824 = vld [vmem:[%s2] sm:$0x1]
        %v826 = vlaneseq
        %v827 = vshrl.u32 %v826, 7
        %v828 = vsub.s32 0, %v827
        %v829 = vrot.slane %v824, %v828
        %v833 = vunpack.c.l.b16 %v820
        %v834 = vunpack.c.l.b16 %v821
        %v835 = vpack.c.b16 %v834, %v833
        %v838 = vunpack.c.l.b16 %v822
        %v839 = vunpack.c.l.b16 %v823
        %v840 = vpack.c.b16 %v839, %v838
        %v843 = vsel %vm550, %v835, 0
        %845 = vmatprep.subr.bf16.mxu0 0
        %846 = vmatpush1.bf16.msra.mxu0 %v840
        %847 = vmatprep.subr.bf16.mxu0 0
        %848 = vmatpush1.bf16.msra.mxu0 0
        %849 = vmatprep.subr.bf16.mxu0 0
        %850 = vmatpush1.bf16.msra.mxu0 0
        %851 = vmatprep.subr.bf16.mxu0 0
        %852 = vmatpush1.bf16.msra.mxu0 0
        %853 = vmatprep.subr.bf16.mxu0 0
        %854 = vmatpush1.bf16.msra.mxu0 0
        %855 = vmatprep.subr.bf16.mxu0 0
        %856 = vmatpush1.bf16.msra.mxu0 0
        %857 = vmatprep.subr.bf16.mxu0 0
        %858 = vmatpush1.bf16.msra.mxu0 0
        %859 = vmatprep.subr.bf16.mxu0 0
        %860 = vmatpush1.bf16.msra.mxu0 0
        %861 = vmatprep.subr.bf16.mxu0 0
        %862 = vmatpush1.bf16.msra.mxu0 0
        %863 = vmatprep.subr.bf16.mxu0 0
        %864 = vmatpush1.bf16.msra.mxu0 0
        %865 = vmatprep.subr.bf16.mxu0 0
        %866 = vmatpush1.bf16.msra.mxu0 0
        %867 = vmatprep.subr.bf16.mxu0 0
        %868 = vmatpush1.bf16.msra.mxu0 0
        %869 = vmatprep.subr.bf16.mxu0 0
        %870 = vmatpush1.bf16.msra.mxu0 0
        %871 = vmatprep.subr.bf16.mxu0 0
        %872 = vmatpush1.bf16.msra.mxu0 0
        %873 = vmatprep.subr.bf16.mxu0 0
        %874 = vmatpush1.bf16.msra.mxu0 0
        %875 = vmatprep.subr.bf16.mxu0 0
        %876 = vmatpush1.bf16.msra.mxu0 0
        %877 = vmatprep.mubr.bf16.mxu0 0
        %878 = vmatmul.mubr.bf16.gmra.mrb[0].mxu0 %v843
        %v879 = vpop.f32.mrb[0].mxu0
        %v880 = vadd.f32 %v829, %v879
        %v881 = vpop.f32.mrb[0].mxu0
        %v882 = vpop.f32.mrb[0].mxu0
        %v883 = vadd.f32 %v829, %v882
        %v884 = vpop.f32.mrb[0].mxu0
        %885 = vdwg.mxu0
        %v886 = vld [vmem:[#allocation2] sm:$0xff]
        %v887 = vld [vmem:[#allocation2 + $0x8] sm:$0xff]
        %v888 = vmul.f32 %v886, 0.9
        %v889 = vmul.f32 %v887, 0.9
        %v890 = vadd.f32 %v880, %v888
        %v891 = vadd.f32 %v883, %v889
        %v892 = vsub.f32 %v890, 2.0
        %v893 = vsub.f32 %v891, 2.0
        %v894 = vmax.f32 %v892, 0.0
        %v895 = vmax.f32 %v893, 0.0
        %vm896 = vcmp.gt.f32.partialorder %v894, 0.0
        %vm897 = vcmp.gt.f32.partialorder %v895, 0.0
        %v898 = vmul.f32 %v890, -0.25
        %v899 = vmul.f32 %v891, -0.25
        %v900 = vsel %vm896, %v898, %v890
        %v901 = vsel %vm897, %v899, %v891
        %902 = vst [vmem:[#allocation2] sm:$0xff] %v900
        %903 = vst [vmem:[#allocation2 + $0x8] sm:$0xff] %v901
        %904 = vst [vmem:[#allocation3] sm:$0xff] %v894
        %905 = vst [vmem:[#allocation3 + $0x8] sm:$0xff] %v895
        %v906 = vld [vmem:[#allocation2] sm:$0xff]
        %v907 = vld [vmem:[#allocation2 + $0x8] sm:$0xff]
        %s908 = scalar_lea.vmem %s465, 64 [#allocation5]
        %909 = vst [vmem:[%s908] sm:$0xff] %v906
        %910 = vst [vmem:[%s908 + $0x8] sm:$0xff] %v907
        %v911 = vld [vmem:[#allocation3] sm:$0xff]
        %v912 = vld [vmem:[#allocation3 + $0x8] sm:$0xff]
        %s913 = scalar_lea.vmem %s472, 64 [#allocation7]
        %914 = vst [vmem:[%s913] sm:$0xff] %v911
        %915 = vst [vmem:[%s913 + $0x8] sm:$0xff] %v912
        %s916 = scalar_lea.vmem %s431, 32 [#allocation4]
        %v917 = vld [vmem:[%s916] sm:$0xf]
        %v918 = vld [vmem:[%s916 + $0x4] sm:$0xf]
        %v919 = vld [vmem:[%s1] sm:$0xf]
        %v920 = vld [vmem:[%s1 + $0x4] sm:$0xf]
        %v921 = vld [vmem:[%s2] sm:$0x1]
        %v923 = vlaneseq
        %v924 = vshrl.u32 %v923, 7
        %v925 = vsub.s32 0, %v924
        %v926 = vrot.slane %v921, %v925
        %v930 = vunpack.c.l.b16 %v917
        %v931 = vunpack.c.l.b16 %v918
        %v932 = vpack.c.b16 %v931, %v930
        %v935 = vunpack.c.l.b16 %v919
        %v936 = vunpack.c.l.b16 %v920
        %v937 = vpack.c.b16 %v936, %v935
        %v940 = vsel %vm550, %v932, 0
        %942 = vmatprep.subr.bf16.mxu0 0
        %943 = vmatpush1.bf16.msra.mxu0 %v937
        %944 = vmatprep.subr.bf16.mxu0 0
        %945 = vmatpush1.bf16.msra.mxu0 0
        %946 = vmatprep.subr.bf16.mxu0 0
        %947 = vmatpush1.bf16.msra.mxu0 0
        %948 = vmatprep.subr.bf16.mxu0 0
        %949 = vmatpush1.bf16.msra.mxu0 0
        %950 = vmatprep.subr.bf16.mxu0 0
        %951 = vmatpush1.bf16.msra.mxu0 0
        %952 = vmatprep.subr.bf16.mxu0 0
        %953 = vmatpush1.bf16.msra.mxu0 0
        %954 = vmatprep.subr.bf16.mxu0 0
        %955 = vmatpush1.bf16.msra.mxu0 0
        %956 = vmatprep.subr.bf16.mxu0 0
        %957 = vmatpush1.bf16.msra.mxu0 0
        %958 = vmatprep.subr.bf16.mxu0 0
        %959 = vmatpush1.bf16.msra.mxu0 0
        %960 = vmatprep.subr.bf16.mxu0 0
        %961 = vmatpush1.bf16.msra.mxu0 0
        %962 = vmatprep.subr.bf16.mxu0 0
        %963 = vmatpush1.bf16.msra.mxu0 0
        %964 = vmatprep.subr.bf16.mxu0 0
        %965 = vmatpush1.bf16.msra.mxu0 0
        %966 = vmatprep.subr.bf16.mxu0 0
        %967 = vmatpush1.bf16.msra.mxu0 0
        %968 = vmatprep.subr.bf16.mxu0 0
        %969 = vmatpush1.bf16.msra.mxu0 0
        %970 = vmatprep.subr.bf16.mxu0 0
        %971 = vmatpush1.bf16.msra.mxu0 0
        %972 = vmatprep.subr.bf16.mxu0 0
        %973 = vmatpush1.bf16.msra.mxu0 0
        %974 = vmatprep.mubr.bf16.mxu0 0
        %975 = vmatmul.mubr.bf16.gmra.mrb[0].mxu0 %v940
        %v976 = vpop.f32.mrb[0].mxu0
        %v977 = vadd.f32 %v926, %v976
        %v978 = vpop.f32.mrb[0].mxu0
        %v979 = vpop.f32.mrb[0].mxu0
        %v980 = vadd.f32 %v926, %v979
        %v981 = vpop.f32.mrb[0].mxu0
        %982 = vdwg.mxu0
        %v983 = vld [vmem:[#allocation2] sm:$0xff]
        %v984 = vld [vmem:[#allocation2 + $0x8] sm:$0xff]
        %v985 = vmul.f32 %v983, 0.9
        %v986 = vmul.f32 %v984, 0.9
        %v987 = vadd.f32 %v977, %v985
        %v988 = vadd.f32 %v980, %v986
        %v989 = vsub.f32 %v987, 2.0
        %v990 = vsub.f32 %v988, 2.0
        %v991 = vmax.f32 %v989, 0.0
        %v992 = vmax.f32 %v990, 0.0
        %vm993 = vcmp.gt.f32.partialorder %v991, 0.0
        %vm994 = vcmp.gt.f32.partialorder %v992, 0.0
        %v995 = vmul.f32 %v987, -0.25
        %v996 = vmul.f32 %v988, -0.25
        %v997 = vsel %vm993, %v995, %v987
        %v998 = vsel %vm994, %v996, %v988
        %999 = vst [vmem:[#allocation2] sm:$0xff] %v997
        %1000 = vst [vmem:[#allocation2 + $0x8] sm:$0xff] %v998
        %1001 = vst [vmem:[#allocation3] sm:$0xff] %v991
        %1002 = vst [vmem:[#allocation3 + $0x8] sm:$0xff] %v992
        %v1003 = vld [vmem:[#allocation2] sm:$0xff]
        %v1004 = vld [vmem:[#allocation2 + $0x8] sm:$0xff]
        %s1005 = scalar_lea.vmem %s465, 80 [#allocation5]
        %1006 = vst [vmem:[%s1005] sm:$0xff] %v1003
        %1007 = vst [vmem:[%s1005 + $0x8] sm:$0xff] %v1004
        %v1008 = vld [vmem:[#allocation3] sm:$0xff]
        %v1009 = vld [vmem:[#allocation3 + $0x8] sm:$0xff]
        %s1010 = scalar_lea.vmem %s472, 80 [#allocation7]
        %1011 = vst [vmem:[%s1010] sm:$0xff] %v1008
        %1012 = vst [vmem:[%s1010 + $0x8] sm:$0xff] %v1009
        %s1013 = scalar_lea.vmem %s431, 40 [#allocation4]
        %v1014 = vld [vmem:[%s1013] sm:$0xf]
        %v1015 = vld [vmem:[%s1013 + $0x4] sm:$0xf]
        %v1016 = vld [vmem:[%s1] sm:$0xf]
        %v1017 = vld [vmem:[%s1 + $0x4] sm:$0xf]
        %v1018 = vld [vmem:[%s2] sm:$0x1]
        %v1020 = vlaneseq
        %v1021 = vshrl.u32 %v1020, 7
        %v1022 = vsub.s32 0, %v1021
        %v1023 = vrot.slane %v1018, %v1022
        %v1027 = vunpack.c.l.b16 %v1014
        %v1028 = vunpack.c.l.b16 %v1015
        %v1029 = vpack.c.b16 %v1028, %v1027
        %v1032 = vunpack.c.l.b16 %v1016
        %v1033 = vunpack.c.l.b16 %v1017
        %v1034 = vpack.c.b16 %v1033, %v1032
        %v1037 = vsel %vm550, %v1029, 0
        %1039 = vmatprep.subr.bf16.mxu0 0
        %1040 = vmatpush1.bf16.msra.mxu0 %v1034
        %1041 = vmatprep.subr.bf16.mxu0 0
        %1042 = vmatpush1.bf16.msra.mxu0 0
        %1043 = vmatprep.subr.bf16.mxu0 0
        %1044 = vmatpush1.bf16.msra.mxu0 0
        %1045 = vmatprep.subr.bf16.mxu0 0
        %1046 = vmatpush1.bf16.msra.mxu0 0
        %1047 = vmatprep.subr.bf16.mxu0 0
        %1048 = vmatpush1.bf16.msra.mxu0 0
        %1049 = vmatprep.subr.bf16.mxu0 0
        %1050 = vmatpush1.bf16.msra.mxu0 0
        %1051 = vmatprep.subr.bf16.mxu0 0
        %1052 = vmatpush1.bf16.msra.mxu0 0
        %1053 = vmatprep.subr.bf16.mxu0 0
        %1054 = vmatpush1.bf16.msra.mxu0 0
        %1055 = vmatprep.subr.bf16.mxu0 0
        %1056 = vmatpush1.bf16.msra.mxu0 0
        %1057 = vmatprep.subr.bf16.mxu0 0
        %1058 = vmatpush1.bf16.msra.mxu0 0
        %1059 = vmatprep.subr.bf16.mxu0 0
        %1060 = vmatpush1.bf16.msra.mxu0 0
        %1061 = vmatprep.subr.bf16.mxu0 0
        %1062 = vmatpush1.bf16.msra.mxu0 0
        %1063 = vmatprep.subr.bf16.mxu0 0
        %1064 = vmatpush1.bf16.msra.mxu0 0
        %1065 = vmatprep.subr.bf16.mxu0 0
        %1066 = vmatpush1.bf16.msra.mxu0 0
        %1067 = vmatprep.subr.bf16.mxu0 0
        %1068 = vmatpush1.bf16.msra.mxu0 0
        %1069 = vmatprep.subr.bf16.mxu0 0
        %1070 = vmatpush1.bf16.msra.mxu0 0
        %1071 = vmatprep.mubr.bf16.mxu0 0
        %1072 = vmatmul.mubr.bf16.gmra.mrb[0].mxu0 %v1037
        %v1073 = vpop.f32.mrb[0].mxu0
        %v1074 = vadd.f32 %v1023, %v1073
        %v1075 = vpop.f32.mrb[0].mxu0
        %v1076 = vpop.f32.mrb[0].mxu0
        %v1077 = vadd.f32 %v1023, %v1076
        %v1078 = vpop.f32.mrb[0].mxu0
        %1079 = vdwg.mxu0
        %v1080 = vld [vmem:[#allocation2] sm:$0xff]
        %v1081 = vld [vmem:[#allocation2 + $0x8] sm:$0xff]
        %v1082 = vmul.f32 %v1080, 0.9
        %v1083 = vmul.f32 %v1081, 0.9
        %v1084 = vadd.f32 %v1074, %v1082
        %v1085 = vadd.f32 %v1077, %v1083
        %v1086 = vsub.f32 %v1084, 2.0
        %v1087 = vsub.f32 %v1085, 2.0
        %v1088 = vmax.f32 %v1086, 0.0
        %v1089 = vmax.f32 %v1087, 0.0
        %vm1090 = vcmp.gt.f32.partialorder %v1088, 0.0
        %vm1091 = vcmp.gt.f32.partialorder %v1089, 0.0
        %v1092 = vmul.f32 %v1084, -0.25
        %v1093 = vmul.f32 %v1085, -0.25
        %v1094 = vsel %vm1090, %v1092, %v1084
        %v1095 = vsel %vm1091, %v1093, %v1085
        %1096 = vst [vmem:[#allocation2] sm:$0xff] %v1094
        %1097 = vst [vmem:[#allocation2 + $0x8] sm:$0xff] %v1095
        %1098 = vst [vmem:[#allocation3] sm:$0xff] %v1088
        %1099 = vst [vmem:[#allocation3 + $0x8] sm:$0xff] %v1089
        %v1100 = vld [vmem:[#allocation2] sm:$0xff]
        %v1101 = vld [vmem:[#allocation2 + $0x8] sm:$0xff]
        %s1102 = scalar_lea.vmem %s465, 96 [#allocation5]
        %1103 = vst [vmem:[%s1102] sm:$0xff] %v1100
        %1104 = vst [vmem:[%s1102 + $0x8] sm:$0xff] %v1101
        %v1105 = vld [vmem:[#allocation3] sm:$0xff]
        %v1106 = vld [vmem:[#allocation3 + $0x8] sm:$0xff]
        %s1107 = scalar_lea.vmem %s472, 96 [#allocation7]
        %1108 = vst [vmem:[%s1107] sm:$0xff] %v1105
        %1109 = vst [vmem:[%s1107 + $0x8] sm:$0xff] %v1106
        %s1110 = scalar_lea.vmem %s431, 48 [#allocation4]
        %v1111 = vld [vmem:[%s1110] sm:$0xf]
        %v1112 = vld [vmem:[%s1110 + $0x4] sm:$0xf]
        %v1113 = vld [vmem:[%s1] sm:$0xf]
        %v1114 = vld [vmem:[%s1 + $0x4] sm:$0xf]
        %v1115 = vld [vmem:[%s2] sm:$0x1]
        %v1117 = vlaneseq
        %v1118 = vshrl.u32 %v1117, 7
        %v1119 = vsub.s32 0, %v1118
        %v1120 = vrot.slane %v1115, %v1119
        %v1124 = vunpack.c.l.b16 %v1111
        %v1125 = vunpack.c.l.b16 %v1112
        %v1126 = vpack.c.b16 %v1125, %v1124
        %v1129 = vunpack.c.l.b16 %v1113
        %v1130 = vunpack.c.l.b16 %v1114
        %v1131 = vpack.c.b16 %v1130, %v1129
        %v1134 = vsel %vm550, %v1126, 0
        %1136 = vmatprep.subr.bf16.mxu0 0
        %1137 = vmatpush1.bf16.msra.mxu0 %v1131
        %1138 = vmatprep.subr.bf16.mxu0 0
        %1139 = vmatpush1.bf16.msra.mxu0 0
        %1140 = vmatprep.subr.bf16.mxu0 0
        %1141 = vmatpush1.bf16.msra.mxu0 0
        %1142 = vmatprep.subr.bf16.mxu0 0
        %1143 = vmatpush1.bf16.msra.mxu0 0
        %1144 = vmatprep.subr.bf16.mxu0 0
        %1145 = vmatpush1.bf16.msra.mxu0 0
        %1146 = vmatprep.subr.bf16.mxu0 0
        %1147 = vmatpush1.bf16.msra.mxu0 0
        %1148 = vmatprep.subr.bf16.mxu0 0
        %1149 = vmatpush1.bf16.msra.mxu0 0
        %1150 = vmatprep.subr.bf16.mxu0 0
        %1151 = vmatpush1.bf16.msra.mxu0 0
        %1152 = vmatprep.subr.bf16.mxu0 0
        %1153 = vmatpush1.bf16.msra.mxu0 0
        %1154 = vmatprep.subr.bf16.mxu0 0
        %1155 = vmatpush1.bf16.msra.mxu0 0
        %1156 = vmatprep.subr.bf16.mxu0 0
        %1157 = vmatpush1.bf16.msra.mxu0 0
        %1158 = vmatprep.subr.bf16.mxu0 0
        %1159 = vmatpush1.bf16.msra.mxu0 0
        %1160 = vmatprep.subr.bf16.mxu0 0
        %1161 = vmatpush1.bf16.msra.mxu0 0
        %1162 = vmatprep.subr.bf16.mxu0 0
        %1163 = vmatpush1.bf16.msra.mxu0 0
        %1164 = vmatprep.subr.bf16.mxu0 0
        %1165 = vmatpush1.bf16.msra.mxu0 0
        %1166 = vmatprep.subr.bf16.mxu0 0
        %1167 = vmatpush1.bf16.msra.mxu0 0
        %1168 = vmatprep.mubr.bf16.mxu0 0
        %1169 = vmatmul.mubr.bf16.gmra.mrb[0].mxu0 %v1134
        %v1170 = vpop.f32.mrb[0].mxu0
        %v1171 = vadd.f32 %v1120, %v1170
        %v1172 = vpop.f32.mrb[0].mxu0
        %v1173 = vpop.f32.mrb[0].mxu0
        %v1174 = vadd.f32 %v1120, %v1173
        %v1175 = vpop.f32.mrb[0].mxu0
        %1176 = vdwg.mxu0
        %v1177 = vld [vmem:[#allocation2] sm:$0xff]
        %v1178 = vld [vmem:[#allocation2 + $0x8] sm:$0xff]
        %v1179 = vmul.f32 %v1177, 0.9
        %v1180 = vmul.f32 %v1178, 0.9
        %v1181 = vadd.f32 %v1171, %v1179
        %v1182 = vadd.f32 %v1174, %v1180
        %v1183 = vsub.f32 %v1181, 2.0
        %v1184 = vsub.f32 %v1182, 2.0
        %v1185 = vmax.f32 %v1183, 0.0
        %v1186 = vmax.f32 %v1184, 0.0
        %vm1187 = vcmp.gt.f32.partialorder %v1185, 0.0
        %vm1188 = vcmp.gt.f32.partialorder %v1186, 0.0
        %v1189 = vmul.f32 %v1181, -0.25
        %v1190 = vmul.f32 %v1182, -0.25
        %v1191 = vsel %vm1187, %v1189, %v1181
        %v1192 = vsel %vm1188, %v1190, %v1182
        %1193 = vst [vmem:[#allocation2] sm:$0xff] %v1191
        %1194 = vst [vmem:[#allocation2 + $0x8] sm:$0xff] %v1192
        %1195 = vst [vmem:[#allocation3] sm:$0xff] %v1185
        %1196 = vst [vmem:[#allocation3 + $0x8] sm:$0xff] %v1186
        %v1197 = vld [vmem:[#allocation2] sm:$0xff]
        %v1198 = vld [vmem:[#allocation2 + $0x8] sm:$0xff]
        %s1199 = scalar_lea.vmem %s465, 112 [#allocation5]
        %1200 = vst [vmem:[%s1199] sm:$0xff] %v1197
        %1201 = vst [vmem:[%s1199 + $0x8] sm:$0xff] %v1198
        %v1202 = vld [vmem:[#allocation3] sm:$0xff]
        %v1203 = vld [vmem:[#allocation3 + $0x8] sm:$0xff]
        %s1204 = scalar_lea.vmem %s472, 112 [#allocation7]
        %1205 = vst [vmem:[%s1204] sm:$0xff] %v1202
        %1206 = vst [vmem:[%s1204 + $0x8] sm:$0xff] %v1203
        %s1207 = scalar_lea.vmem %s431, 56 [#allocation4]
        %v1208 = vld [vmem:[%s1207] sm:$0xf]
        %v1209 = vld [vmem:[%s1207 + $0x4] sm:$0xf]
        %v1210 = vld [vmem:[%s1] sm:$0xf]
        %v1211 = vld [vmem:[%s1 + $0x4] sm:$0xf]
        %v1212 = vld [vmem:[%s2] sm:$0x1]
        %v1214 = vlaneseq
        %v1215 = vshrl.u32 %v1214, 7
        %v1216 = vsub.s32 0, %v1215
        %v1217 = vrot.slane %v1212, %v1216
        %v1221 = vunpack.c.l.b16 %v1208
        %v1222 = vunpack.c.l.b16 %v1209
        %v1223 = vpack.c.b16 %v1222, %v1221
        %v1226 = vunpack.c.l.b16 %v1210
        %v1227 = vunpack.c.l.b16 %v1211
        %v1228 = vpack.c.b16 %v1227, %v1226
        %v1231 = vsel %vm550, %v1223, 0
        %1233 = vmatprep.subr.bf16.mxu0 0
        %1234 = vmatpush1.bf16.msra.mxu0 %v1228
        %1235 = vmatprep.subr.bf16.mxu0 0
        %1236 = vmatpush1.bf16.msra.mxu0 0
        %1237 = vmatprep.subr.bf16.mxu0 0
        %1238 = vmatpush1.bf16.msra.mxu0 0
        %1239 = vmatprep.subr.bf16.mxu0 0
        %1240 = vmatpush1.bf16.msra.mxu0 0
        %1241 = vmatprep.subr.bf16.mxu0 0
        %1242 = vmatpush1.bf16.msra.mxu0 0
        %1243 = vmatprep.subr.bf16.mxu0 0
        %1244 = vmatpush1.bf16.msra.mxu0 0
        %1245 = vmatprep.subr.bf16.mxu0 0
        %1246 = vmatpush1.bf16.msra.mxu0 0
        %1247 = vmatprep.subr.bf16.mxu0 0
        %1248 = vmatpush1.bf16.msra.mxu0 0
        %1249 = vmatprep.subr.bf16.mxu0 0
        %1250 = vmatpush1.bf16.msra.mxu0 0
        %1251 = vmatprep.subr.bf16.mxu0 0
        %1252 = vmatpush1.bf16.msra.mxu0 0
        %1253 = vmatprep.subr.bf16.mxu0 0
        %1254 = vmatpush1.bf16.msra.mxu0 0
        %1255 = vmatprep.subr.bf16.mxu0 0
        %1256 = vmatpush1.bf16.msra.mxu0 0
        %1257 = vmatprep.subr.bf16.mxu0 0
        %1258 = vmatpush1.bf16.msra.mxu0 0
        %1259 = vmatprep.subr.bf16.mxu0 0
        %1260 = vmatpush1.bf16.msra.mxu0 0
        %1261 = vmatprep.subr.bf16.mxu0 0
        %1262 = vmatpush1.bf16.msra.mxu0 0
        %1263 = vmatprep.subr.bf16.mxu0 0
        %1264 = vmatpush1.bf16.msra.mxu0 0
        %1265 = vmatprep.mubr.bf16.mxu0 0
        %1266 = vmatmul.mubr.bf16.gmra.mrb[0].mxu0 %v1231
        %v1267 = vpop.f32.mrb[0].mxu0
        %v1268 = vadd.f32 %v1217, %v1267
        %v1269 = vpop.f32.mrb[0].mxu0
        %v1270 = vpop.f32.mrb[0].mxu0
        %v1271 = vadd.f32 %v1217, %v1270
        %v1272 = vpop.f32.mrb[0].mxu0
        %1273 = vdwg.mxu0
        %v1274 = vld [vmem:[#allocation2] sm:$0xff]
        %v1275 = vld [vmem:[#allocation2 + $0x8] sm:$0xff]
        %v1276 = vmul.f32 %v1274, 0.9
        %v1277 = vmul.f32 %v1275, 0.9
        %v1278 = vadd.f32 %v1268, %v1276
        %v1279 = vadd.f32 %v1271, %v1277
        %v1280 = vsub.f32 %v1278, 2.0
        %v1281 = vsub.f32 %v1279, 2.0
        %v1282 = vmax.f32 %v1280, 0.0
        %v1283 = vmax.f32 %v1281, 0.0
        %vm1284 = vcmp.gt.f32.partialorder %v1282, 0.0
        %vm1285 = vcmp.gt.f32.partialorder %v1283, 0.0
        %v1286 = vmul.f32 %v1278, -0.25
        %v1287 = vmul.f32 %v1279, -0.25
        %v1288 = vsel %vm1284, %v1286, %v1278
        %v1289 = vsel %vm1285, %v1287, %v1279
        %1290 = vst [vmem:[#allocation2] sm:$0xff] %v1288
        %1291 = vst [vmem:[#allocation2 + $0x8] sm:$0xff] %v1289
        %1292 = vst [vmem:[#allocation3] sm:$0xff] %v1282
        %1293 = vst [vmem:[#allocation3 + $0x8] sm:$0xff] %v1283
        %v1294 = vld [vmem:[#allocation2] sm:$0xff]
        %v1295 = vld [vmem:[#allocation2 + $0x8] sm:$0xff]
        %1296 = vst [vmem:[%s479] sm:$0xff] %v1294
        %1297 = vst [vmem:[%s479 + $0x8] sm:$0xff] %v1295
        %v1298 = vld [vmem:[#allocation3] sm:$0xff]
        %v1299 = vld [vmem:[#allocation3 + $0x8] sm:$0xff]
        %1300 = vst [vmem:[%s486] sm:$0xff] %v1298
        %1301 = vst [vmem:[%s486 + $0x8] sm:$0xff] %v1299
        %s1302 = sand.u32 %s173, 1
        %s1303 = scalar_lea.sflag [#allocation6], %s1302
        %s1304 = sand.u32 %s173, 1
        %s1305 = smul.addr %s1304, 128
        %s1306 = scalar_lea.vmem [#allocation5], %s1305
        %s1307 = sand.u32 %s29, 1
        %s1308 = scalar_lea.sflag [#allocation8], %s1307
        %s1309 = sand.u32 %s201, 1
        %s1310 = smul.addr %s1309, 128
        %s1311 = scalar_lea.vmem [#allocation7], %s1310
        %s1312 = sand.u32 %s29, 1
        %s1313 = scalar_lea.sflag [#allocation8], %s1312
        %s1314 = sand.u32 %s227, 1
        %s1315 = smul.addr %s1314, 16
        %s1316 = scalar_lea.vmem [#allocation9], %s1315
        %s1317 = sand.u32 %s253, 1
        %s1318 = scalar_lea.sflag [#allocation11], %s1317
        %s1319 = sand.u32 %s253, 1
        %s1320 = smul.addr %s1319, 16
        %s1321 = scalar_lea.vmem [#allocation10], %s1320
        // Predicated region
        $region86: #{_lambda_.1} parent=76 // pred_check
          %p1322 = pneg %p183
        $region87: #{_lambda_.1} parent=76 // pred_check_branch
          %1324 = sbr.rel (%p1322) target = $region89
        $region88: #{_lambda_.1} parent=76 // pred_region
          #allocation13 [shape = 'u32[6]{0}', space=smem, size = 0x18, scoped, tag = 'DMA stride descriptor']
          %s1325 = smul.u32 8, %s34
          %s1326 = smul.u32 2, %s33
          %s1328 = ssub.s32 2048, 2048
          %1329 = vsyncadd %s1303, %s1328
          %s1330 = smul.addr %s1325, 4
          %s1331 = sadd.s32 %s1326, %s1330
          %s1332 = smul.addr %s1331, 128
          %s1333 = scalar_lea.hbm %s5, %s1332
          %s1335 = sshll.u32 1, 14
          %s1336 = sxor.u32 4294967295, %s1335
          %s1339 = sshll.u32 7, 18
          %s1340 = sxor.u32 4294967295, %s1339
          %s1341 = sand.u32 0, %s1340
          %s1343 = sor.u32 %s1341, 0
          %s1345 = sshll.u32 3, 24
          %s1346 = sxor.u32 4294967295, %s1345
          %s1347 = sand.u32 %s1343, %s1346
          %s1349 = sor.u32 %s1347, 0
          %s1350 = sshll.u32 %s1306, 4
          %s1351 = int_to_ptr.vmem [resolvable:$true] %s1350
          %1357 = sst [smem:[#allocation13]] 256
          %s1358 = scalar_lea.smem [#allocation13], 1
          %1359 = sst [smem:[%s1358]] 512
          %s1360 = scalar_lea.smem [#allocation13], 2
          %1361 = sst [smem:[%s1360]] 2
          %s1362 = scalar_lea.smem [#allocation13], 3
          %1363 = sst [smem:[%s1362]] 128
          %s1364 = scalar_lea.smem [#allocation13], 4
          %1365 = sst [smem:[%s1364]] 128
          %s1366 = scalar_lea.smem [#allocation13], 5
          %1367 = sst [smem:[%s1366]] 8
          %1369 = dma.general %s1351, 2048, %s1333, %s1303, [#allocation12], [#allocation13], %s1349, 0
        $region89: #{_lambda_.1} parent=76 // pred_fallthru
          _
        // Predicated region
        $region90: #{_lambda_.1} parent=76 // pred_check
          %p1370 = pneg %p211
        $region91: #{_lambda_.1} parent=76 // pred_check_branch
          %1372 = sbr.rel (%p1370) target = $region93
        $region92: #{_lambda_.1} parent=76 // pred_region
          #allocation15 [shape = 'u32[6]{0}', space=smem, size = 0x18, scoped, tag = 'DMA stride descriptor']
          %s1373 = smul.u32 8, %s34
          %s1374 = smul.u32 2, %s33
          %s1376 = ssub.s32 2048, 2048
          %1377 = vsyncadd %s1308, %s1376
          %s1378 = smul.addr %s1373, 4
          %s1379 = sadd.s32 %s1374, %s1378
          %s1380 = smul.addr %s1379, 128
          %s1381 = scalar_lea.hbm %s6, %s1380
          %s1383 = sshll.u32 1, 14
          %s1384 = sxor.u32 4294967295, %s1383
          %s1387 = sshll.u32 7, 18
          %s1388 = sxor.u32 4294967295, %s1387
          %s1389 = sand.u32 0, %s1388
          %s1391 = sor.u32 %s1389, 0
          %s1393 = sshll.u32 3, 24
          %s1394 = sxor.u32 4294967295, %s1393
          %s1395 = sand.u32 %s1391, %s1394
          %s1397 = sor.u32 %s1395, 0
          %s1398 = sshll.u32 %s1311, 4
          %s1399 = int_to_ptr.vmem [resolvable:$true] %s1398
          %1405 = sst [smem:[#allocation15]] 256
          %s1406 = scalar_lea.smem [#allocation15], 1
          %1407 = sst [smem:[%s1406]] 512
          %s1408 = scalar_lea.smem [#allocation15], 2
          %1409 = sst [smem:[%s1408]] 2
          %s1410 = scalar_lea.smem [#allocation15], 3
          %1411 = sst [smem:[%s1410]] 128
          %s1412 = scalar_lea.smem [#allocation15], 4
          %1413 = sst [smem:[%s1412]] 128
          %s1414 = scalar_lea.smem [#allocation15], 5
          %1415 = sst [smem:[%s1414]] 8
          %1417 = dma.general %s1399, 2048, %s1381, %s1308, [#allocation14], [#allocation15], %s1397, 0
        $region93: #{_lambda_.1} parent=76 // pred_fallthru
          _
        // Predicated region
        $region94: #{_lambda_.1} parent=76 // pred_check
          %p1418 = pneg %p237
        $region95: #{_lambda_.1} parent=76 // pred_check_branch
          %1420 = sbr.rel (%p1418) target = $region97
        $region96: #{_lambda_.1} parent=76 // pred_region
          %s1421 = smul.u32 2, %s33
          %s1423 = ssub.s32 256, 256
          %1424 = vsyncadd %s1313, %s1423
          %s1425 = smul.addr %s1421, 128
          %s1426 = scalar_lea.hbm %s7, %s1425
          %s1427 = sshll.u32 %s1316, 4
          %s1428 = int_to_ptr.vmem [resolvable:$true] %s1427
          %1433 = dma.vmem_to_hbm [thread:$0]  %s1428, 256, %s1426, %s1313, 128, 128, 8
        $region97: #{_lambda_.1} parent=76 // pred_fallthru
          _
        // Predicated region
        $region98: #{_lambda_.1} parent=76 // pred_check
          %p1434 = pneg %p263
        $region99: #{_lambda_.1} parent=76 // pred_check_branch
          %1436 = sbr.rel (%p1434) target = $region101
        $region100: #{_lambda_.1} parent=76 // pred_region
          %s1437 = smul.u32 2, %s33
          %s1439 = ssub.s32 256, 256
          %1440 = vsyncadd %s1318, %s1439
          %s1441 = smul.addr %s1437, 128
          %s1442 = scalar_lea.hbm %s8, %s1441
          %s1443 = sshll.u32 %s1321, 4
          %s1444 = int_to_ptr.vmem [resolvable:$true] %s1443
          %1449 = dma.vmem_to_hbm [thread:$0]  %s1444, 256, %s1442, %s1318, 128, 128, 8
        $region101: #{_lambda_.1} parent=76 // pred_fallthru
          _
      $region77: #{_lambda_.1} parent=5 // pred_fallthru
        _
      %p1450 = scmp.le.s32.totalorder 2, %s24
      // Predicated region
      $region102: #{_lambda_.1} parent=5 // pred_check
        %p1451 = pneg %p1450
      $region103: #{_lambda_.1} parent=5 // pred_check_branch
        %1453 = sbr.rel (%p1451) target = $region105
      $region104: #{_lambda_.1} parent=5 // pred_region
        %s1454 = ssub.s32 %s24, 2
        // Predicated region
        $region106: #{_lambda_.1} parent=104 // pred_check
          %p1455 = pneg %p189
        $region107: #{_lambda_.1} parent=104 // pred_check_branch
          %1457 = sbr.rel (%p1455) target = $region109
        $region108: #{_lambda_.1} parent=104 // pred_region
          %s1458 = sand.u32 %s174, 1
          %s1459 = scalar_lea.sflag [#allocation6], %s1458
          %s1460 = sand.u32 %s174, 1
          %s1461 = smul.addr %s1460, 128
          %s1462 = scalar_lea.vmem [#allocation5], %s1461
          %1463 = dma.done %s1459, 2048
        $region109: #{_lambda_.1} parent=104 // pred_fallthru
          _
        // Predicated region
        $region110: #{_lambda_.1} parent=104 // pred_check
          %p1464 = pneg %p217
        $region111: #{_lambda_.1} parent=104 // pred_check_branch
          %1466 = sbr.rel (%p1464) target = $region113
        $region112: #{_lambda_.1} parent=104 // pred_region
          %s1467 = sand.u32 %s30, 1
          %s1468 = scalar_lea.sflag [#allocation8], %s1467
          %s1469 = sand.u32 %s202, 1
          %s1470 = smul.addr %s1469, 128
          %s1471 = scalar_lea.vmem [#allocation7], %s1470
          %1472 = dma.done %s1468, 2048
        $region113: #{_lambda_.1} parent=104 // pred_fallthru
          _
        // Predicated region
        $region114: #{_lambda_.1} parent=104 // pred_check
          %p1473 = pneg %p243
        $region115: #{_lambda_.1} parent=104 // pred_check_branch
          %1475 = sbr.rel (%p1473) target = $region117
        $region116: #{_lambda_.1} parent=104 // pred_region
          %s1476 = sand.u32 %s30, 1
          %s1477 = scalar_lea.sflag [#allocation8], %s1476
          %s1478 = sand.u32 %s228, 1
          %s1479 = smul.addr %s1478, 16
          %s1480 = scalar_lea.vmem [#allocation9], %s1479
          %1481 = dma.done %s1477, 256
        $region117: #{_lambda_.1} parent=104 // pred_fallthru
          _
        // Predicated region
        $region118: #{_lambda_.1} parent=104 // pred_check
          %p1482 = pneg %p269
        $region119: #{_lambda_.1} parent=104 // pred_check_branch
          %1484 = sbr.rel (%p1482) target = $region121
        $region120: #{_lambda_.1} parent=104 // pred_region
          %s1485 = sand.u32 %s254, 1
          %s1486 = scalar_lea.sflag [#allocation11], %s1485
          %s1487 = sand.u32 %s254, 1
          %s1488 = smul.addr %s1487, 16
          %s1489 = scalar_lea.vmem [#allocation10], %s1488
          %1490 = dma.done %s1486, 256
        $region121: #{_lambda_.1} parent=104 // pred_fallthru
          _
      $region105: #{_lambda_.1} parent=5 // pred_fallthru
        _
    $region6: #{_lambda_.1} parent=1 // loop_footer
      %s28 = sadd.s32 1, %s24
    $region7: #{_lambda_.1} parent=1 // loop_footer_branch
      %23 = sbr.rel target = $region3
    $region8: #{_lambda_.1} parent=1 // loop_exit
      _
    %1491 = vsyncpa [#allocation6], 1
    %s1492 = scalar_lea.sflag [#allocation6], 1
    %1493 = vsyncpa %s1492, 1
    %1494 = vsyncpa [#allocation8], 1
    %s1495 = scalar_lea.sflag [#allocation8], 1
    %1496 = vsyncpa %s1495, 1
    %1497 = vsyncpa [#allocation11], 1
    %s1498 = scalar_lea.sflag [#allocation11], 1
    %1499 = vsyncpa %s1498, 1

</llo_original>
